<compile_context>
chip_gen: v5e
topology: v5e:2x2
jax: 0.10.0
libtpu: 0.0.40
codegen_flags: <defaults>
</compile_context>

<pallas_src>
import functools

import jax
import jax.numpy as jnp
from jax import lax
from jax.experimental import pallas as pl
from jax.experimental.pallas import tpu as pltpu


def _round_up(x, m):
    return (x + m - 1) // m * m


def _pick_tile(n, candidates):
    for c in candidates:
        if n % c == 0:
            return c
    return n


# ---------------- sweep 0: lin1  (h = X @ W1 + b1) ----------------
def _lin1_kernel(x_ref, w1_ref, b1_ref, h_ref):
    h = jnp.dot(x_ref[...], w1_ref[...], preferred_element_type=jnp.float32)
    h = h + b1_ref[...]
    h_ref[...] = h.astype(h_ref.dtype)


# ---------------- sweep 1: one propagation hop (y = A_hat @ h) ----------------
def _prop_kernel(a_ref, h_ref, y_ref, acc_ref):
    @pl.when(pl.program_id(1) == 0)
    def _():
        acc_ref[...] = jnp.zeros_like(acc_ref)

    acc_ref[...] += jnp.dot(a_ref[...], h_ref[...],
                            preferred_element_type=jnp.float32)

    @pl.when(pl.program_id(1) == pl.num_programs(1) - 1)
    def _():
        y_ref[...] = acc_ref[...].astype(y_ref.dtype)


# ---------------- sweep 2: hop 2 + lin2 + log_softmax ----------------
def _hop2_epilogue_kernel(a_ref, h1c_ref, h_row_ref, h1_row_ref,
                          w2_ref, b2_ref, out_ref, acc_ref, feat_ref,
                          *, hp, c_valid):
    k = pl.program_id(1)

    @pl.when(k == 0)
    def _():
        acc_ref[...] = jnp.zeros_like(acc_ref)

    # h2 partial accumulation (f32) over column tiles of A_hat.
    acc_ref[...] += jnp.dot(a_ref[...], h1c_ref[...],
                            preferred_element_type=jnp.float32)

    @pl.when(k == pl.num_programs(1) - 1)
    def _():
        # concat([relu(h), relu(h1), relu(h2)]) along the lane axis (three
        # 128-aligned stores), then one K=3H contraction for lin2 so the MXU
        # pipeline stays full.
        m0 = jnp.maximum(h_row_ref[...], 0)                       # bf16 relu is exact
        m1 = jnp.maximum(h1_row_ref[...], 0)
        m2 = jnp.maximum(acc_ref[...], 0.0)
        feat_ref[:, 0:hp] = m0.astype(feat_ref.dtype)
        feat_ref[:, hp:2 * hp] = m1.astype(feat_ref.dtype)
        feat_ref[:, 2 * hp:3 * hp] = m2.astype(feat_ref.dtype)

        logits = jnp.dot(feat_ref[...], w2_ref[...],
                         preferred_element_type=jnp.float32) + b2_ref[...]

        cp = logits.shape[1]
        if c_valid < cp:  # mask padded class lanes out of the softmax
            lane = lax.broadcasted_iota(jnp.int32, logits.shape, 1)
            logits = jnp.where(lane < c_valid, logits, -1e30)

        m = jnp.max(logits, axis=1, keepdims=True)
        s = logits - m
        lse = jnp.log(jnp.sum(jnp.exp(s), axis=1, keepdims=True))
        out_ref[...] = s - lse


@jax.jit
def mixhop_forward(x, a_hat, w1, b1, w2, b2):
    N, F = x.shape
    H = w1.shape[1]
    C = w2.shape[1]

    # Lane-dense padding (multiples of 128 on every lane axis).
    Np = _round_up(N, 128)
    Fp = _round_up(F, 128)
    Hp = _round_up(H, 128)
    Cp = _round_up(C, 128)

    TN = _pick_tile(Np, (256, 128))                 # row tile of A_hat / nodes
    TK = _pick_tile(Np, (1024, 512, 256, 128))      # column / reduction tile of A_hat
    n_row = Np // TN
    n_col = Np // TK

    f32 = jnp.float32
    bf16 = jnp.bfloat16

    # Padded, bf16-cast operands. A_hat padded with zeros AFTER normalization
    # (padded rows/cols contribute nothing; padded nodes sliced off at the end).
    xp = jnp.zeros((Np, Fp), bf16).at[:N, :F].set(x.astype(bf16))
    ap = jnp.zeros((Np, Np), bf16).at[:N, :N].set(a_hat.astype(bf16))
    w1p = jnp.zeros((Fp, Hp), bf16).at[:F, :H].set(w1.astype(bf16))
    b1p = jnp.zeros((1, Hp), f32).at[:, :H].set(b1.astype(f32))
    w2b = w2.astype(bf16)
    w2p = jnp.zeros((3 * Hp, Cp), bf16)
    w2p = w2p.at[0:H, :C].set(w2b[0:H])
    w2p = w2p.at[Hp:Hp + H, :C].set(w2b[H:2 * H])
    w2p = w2p.at[2 * Hp:2 * Hp + H, :C].set(w2b[2 * H:3 * H])
    b2p = jnp.zeros((1, Cp), f32).at[:, :C].set(b2.astype(f32))

    vmem_limit = 48 * 1024 * 1024  # fits v7x's 64 MiB/TC with headroom; > v5e 16 MiB default
    cparams_1d = pltpu.CompilerParams(dimension_semantics=("parallel",),
                                      vmem_limit_bytes=vmem_limit)
    cparams_2d = pltpu.CompilerParams(dimension_semantics=("parallel", "arbitrary"),
                                      vmem_limit_bytes=vmem_limit)

    # ---- sweep 0: lin1 ----
    h = pl.pallas_call(
        _lin1_kernel,
        out_shape=jax.ShapeDtypeStruct((Np, Hp), bf16),
        grid_spec=pltpu.PrefetchScalarGridSpec(
            num_scalar_prefetch=0, grid=(n_row,),
            in_specs=[pl.BlockSpec((TN, Fp), lambda i: (i, 0)),
                      pl.BlockSpec((Fp, Hp), lambda i: (0, 0)),
                      pl.BlockSpec((1, Hp), lambda i: (0, 0))],
            out_specs=pl.BlockSpec((TN, Hp), lambda i: (i, 0))),
        compiler_params=cparams_1d,
        cost_estimate=pl.CostEstimate(
            flops=2 * Np * Fp * Hp, transcendentals=0,
            bytes_accessed=2 * (Np * Fp + Fp * Hp + Np * Hp) + 4 * Hp),
    )(xp, w1p, b1p)

    # ---- sweep 1: h1 = A_hat @ h ----
    h1 = pl.pallas_call(
        _prop_kernel,
        out_shape=jax.ShapeDtypeStruct((Np, Hp), bf16),
        grid_spec=pltpu.PrefetchScalarGridSpec(
            num_scalar_prefetch=0, grid=(n_row, n_col),
            in_specs=[pl.BlockSpec((TN, TK), lambda i, k: (i, k)),
                      pl.BlockSpec((TK, Hp), lambda i, k: (k, 0))],
            out_specs=pl.BlockSpec((TN, Hp), lambda i, k: (i, 0)),
            scratch_shapes=[pltpu.VMEM((TN, Hp), f32)]),
        compiler_params=cparams_2d,
        cost_estimate=pl.CostEstimate(
            flops=2 * Np * Np * Hp, transcendentals=0,
            bytes_accessed=2 * (Np * Np + 2 * Np * Hp)),
    )(ap, h)

    # ---- sweep 2: h2 = A_hat @ h1, fused lin2 + log_softmax ----
    kernel3 = functools.partial(_hop2_epilogue_kernel, hp=Hp, c_valid=C)
    out_p = pl.pallas_call(
        kernel3,
        out_shape=jax.ShapeDtypeStruct((Np, Cp), f32),
        grid_spec=pltpu.PrefetchScalarGridSpec(
            num_scalar_prefetch=0, grid=(n_row, n_col),
            in_specs=[pl.BlockSpec((TN, TK), lambda i, k: (i, k)),     # A_hat tile
                      pl.BlockSpec((TK, Hp), lambda i, k: (k, 0)),     # h1 column tile
                      pl.BlockSpec((TN, Hp), lambda i, k: (i, 0)),     # h row tile (m0)
                      pl.BlockSpec((TN, Hp), lambda i, k: (i, 0)),     # h1 row tile (m1)
                      pl.BlockSpec((3 * Hp, Cp), lambda i, k: (0, 0)),
                      pl.BlockSpec((1, Cp), lambda i, k: (0, 0))],
            out_specs=pl.BlockSpec((TN, Cp), lambda i, k: (i, 0)),
            scratch_shapes=[pltpu.VMEM((TN, Hp), f32),
                            pltpu.VMEM((TN, 3 * Hp), bf16)]),
        compiler_params=cparams_2d,
        cost_estimate=pl.CostEstimate(
            flops=2 * Np * Np * Hp + 2 * Np * 3 * Hp * Cp,
            transcendentals=Np * (Cp + 1),
            bytes_accessed=2 * (Np * Np + 3 * Np * Hp + 3 * Hp * Cp) + 4 * Np * Cp),
    )(ap, h1, h, h1, w2p, b2p)

    return out_p[:N, :C]


def build_gcn_norm_adj(edge_index, num_nodes):
    """Dense D^{-1/2}(A + I)D^{-1/2}, matching PyG gcn_norm with add_self_loops=True."""
    src, dst = edge_index[0], edge_index[1]
    a = jnp.zeros((num_nodes, num_nodes), jnp.float32)
    a = a.at[src, dst].set(1.0)
    a = a.at[dst, src].set(1.0)          # undirected graph (symmetric edge_index)
    a = a + jnp.eye(num_nodes, dtype=jnp.float32)
    deg = jnp.sum(a, axis=1)
    d_inv_sqrt = 1.0 / jnp.sqrt(deg)
    return d_inv_sqrt[:, None] * a * d_inv_sqrt[None, :]


def reference_forward(x, a_hat, w1, b1, w2, b2):
    h = x @ w1 + b1
    m0 = jnp.maximum(h, 0.0)
    h1 = a_hat @ h
    m1 = jnp.maximum(h1, 0.0)
    h2 = a_hat @ h1
    m2 = jnp.maximum(h2, 0.0)
    feat = jnp.concatenate([m0, m1, m2], axis=1)
    logits = feat @ w2 + b2
    return jax.nn.log_softmax(logits, axis=1)


if __name__ == "__main__":
    # Small shapes consistent with the module; N chosen so the padded node axis (384)
    # exercises a real (3 row-tiles x 3 reduction-tiles) grid.
    N, F, H, C = 300, 48, 64, 7

    key = jax.random.PRNGKey(0)
    kx, ke, kw1, kb1, kw2, kb2 = jax.random.split(key, 6)

    x = jax.random.normal(kx, (N, F), jnp.float32)

    # Deterministic edge list: ring + a few random chords.
    ring_src = jnp.arange(N, dtype=jnp.int32)
    ring_dst = (ring_src + 1) % N
    chord_src = jax.random.randint(ke, (64,), 0, N, dtype=jnp.int32)
    chord_dst = (chord_src + 7) % N
    edge_index = jnp.stack(
        [jnp.concatenate([ring_src, chord_src]),
         jnp.concatenate([ring_dst, chord_dst])], axis=0)
    a_hat = build_gcn_norm_adj(edge_index, N)

    # Deterministic parameter init (Linear shapes: lin1 [H,F], lin2 [C,3H]; stored transposed).
    w1 = jax.random.normal(kw1, (F, H), jnp.float32) * 0.1
    b1 = jax.random.normal(kb1, (1, H), jnp.float32) * 0.1
    w2 = jax.random.normal(kw2, (3 * H, C), jnp.float32) * 0.1
    b2 = jax.random.normal(kb2, (1, C), jnp.float32) * 0.1

    # TODO(synk): dropout is omitted (inference / training=False path).
    out = mixhop_forward(x, a_hat, w1, b1, w2, b2)
    out = jax.block_until_ready(out)

    ref = reference_forward(x, a_hat, w1, b1, w2, b2)
    assert out.shape == (N, C)
    # bf16 MXU operands with f32 accumulation vs pure-f32 reference -> relaxed tolerance.
    assert jnp.allclose(out, ref, atol=3e-2, rtol=3e-2), "mismatch vs pure-JAX reference"

    print("KERNEL_OK")
</pallas_src>

<mosaic_0001>
module attributes {stable_mosaic.version = 11 : i64} {
  func.func @_lin1_kernel(%arg0: i32, %arg1: memref<128x128xbf16, #tpu.memory_space<vmem>>, %arg2: memref<128x128xbf16, #tpu.memory_space<vmem>>, %arg3: memref<1x128xf32, #tpu.memory_space<vmem>>, %arg4: memref<128x128xbf16, #tpu.memory_space<vmem>>) attributes {dimension_semantics = [#tpu.dimension_semantics<parallel>], iteration_bounds = array<i64: 3>, scalar_prefetch = 0 : i64, scratch_operands = 0 : i64, tpu.core_type = #tpu.core_type<tc>, window_params = [{transform_indices = @transform_0, window_bounds = array<i64: 128, 128>}, {pipeline_mode = #tpu.pipeline_mode<synchronous>, transform_indices = @transform_1, window_bounds = array<i64: 128, 128>}, {pipeline_mode = #tpu.pipeline_mode<synchronous>, transform_indices = @transform_2, window_bounds = array<i64: 1, 128>}, {transform_indices = @transform_3, window_bounds = array<i64: 128, 128>}]} {
    %c0 = arith.constant 0 : index
    %c0_0 = arith.constant 0 : index
    %0 = vector.load %arg1[%c0, %c0_0] : memref<128x128xbf16, #tpu.memory_space<vmem>>, vector<128x128xbf16>
    %c0_1 = arith.constant 0 : index
    %c0_2 = arith.constant 0 : index
    %1 = vector.load %arg2[%c0_1, %c0_2] : memref<128x128xbf16, #tpu.memory_space<vmem>>, vector<128x128xbf16>
    %cst = arith.constant dense<0.000000e+00> : vector<128x128xf32>
    %2 = tpu.matmul %0, %1, %cst {dimension_numbers = #tpu.dot_dimension_numbers<[1], [0], [0], [1], [0, 0, 1, 1], [], []>} : vector<128x128xbf16>, vector<128x128xbf16>, vector<128x128xf32> -> vector<128x128xf32>
    %c0_3 = arith.constant 0 : index
    %c0_4 = arith.constant 0 : index
    %3 = vector.load %arg3[%c0_3, %c0_4] : memref<1x128xf32, #tpu.memory_space<vmem>>, vector<1x128xf32>
    %4 = vector.broadcast %3 : vector<1x128xf32> to vector<128x128xf32>
    %5 = arith.addf %2, %4 : vector<128x128xf32>
    %6 = arith.truncf %5 : vector<128x128xf32> to vector<128x128xbf16>
    %c0_5 = arith.constant 0 : index
    %c0_6 = arith.constant 0 : index
    %7 = vector.load %arg4[%c0_5, %c0_6] : memref<128x128xbf16, #tpu.memory_space<vmem>>, vector<128x128xbf16>
    tpu.vector_store %arg4[%c0_5, %c0_6], %6 {strides = array<i32>} : memref<128x128xbf16, #tpu.memory_space<vmem>>, vector<128x128xbf16>,
    return
  }
  func.func @transform_0(%arg0: i32) -> (i32, i32) {
    %c0_i32 = arith.constant 0 : i32
    %c0_i32_0 = arith.constant 0 : i32
    return %arg0, %c0_i32 : i32, i32
  }
  func.func @transform_1(%arg0: i32) -> (i32, i32) {
    %c0_i32 = arith.constant 0 : i32
    %c0_i32_0 = arith.constant 0 : i32
    %c0_i32_1 = arith.constant 0 : i32
    return %c0_i32, %c0_i32_0 : i32, i32
  }
  func.func @transform_2(%arg0: i32) -> (i32, i32) {
    %c0_i32 = arith.constant 0 : i32
    %c0_i32_0 = arith.constant 0 : i32
    %c0_i32_1 = arith.constant 0 : i32
    return %c0_i32, %c0_i32_0 : i32, i32
  }
  func.func @transform_3(%arg0: i32) -> (i32, i32) {
    %c0_i32 = arith.constant 0 : i32
    %c0_i32_0 = arith.constant 0 : i32
    return %arg0, %c0_i32 : i32, i32
  }
}

module attributes {stable_mosaic.version = 11 : i64} {
  func.func @_prop_kernel(%arg0: i32, %arg1: i32, %arg2: memref<128x128xbf16, #tpu.memory_space<vmem>>, %arg3: memref<128x128xbf16, #tpu.memory_space<vmem>>, %arg4: memref<128x128xbf16, #tpu.memory_space<vmem>>, %arg5: memref<128x128xf32, #tpu.memory_space<vmem>>) attributes {dimension_semantics = [#tpu.dimension_semantics<parallel>, #tpu.dimension_semantics<arbitrary>], iteration_bounds = array<i64: 3, 3>, scalar_prefetch = 0 : i64, scratch_operands = 1 : i64, tpu.core_type = #tpu.core_type<tc>, window_params = [{transform_indices = @transform_0, window_bounds = array<i64: 128, 128>}, {transform_indices = @transform_1, window_bounds = array<i64: 128, 128>}, {transform_indices = @transform_2, window_bounds = array<i64: 128, 128>}]} {
    %c0_i32 = arith.constant 0 : i32
    %0 = arith.cmpi eq, %arg1, %c0_i32 : i32
    %1 = arith.extui %0 : i1 to i32
    %c0_i32_0 = arith.constant 0 : i32
    %2 = arith.cmpi ne, %1, %c0_i32_0 : i32
    scf.if %2 {
      %cst_9 = arith.constant 0.000000e+00 : f32
      %12 = vector.broadcast %cst_9 : f32 to vector<128x128xf32>
      %c0_10 = arith.constant 0 : index
      %c0_11 = arith.constant 0 : index
      %13 = vector.load %arg5[%c0_10, %c0_11] : memref<128x128xf32, #tpu.memory_space<vmem>>, vector<128x128xf32>
      tpu.vector_store %arg5[%c0_10, %c0_11], %12 {strides = array<i32>} : memref<128x128xf32, #tpu.memory_space<vmem>>, vector<128x128xf32>,
    } else {
    }
    %c0 = arith.constant 0 : index
    %c0_1 = arith.constant 0 : index
    %3 = vector.load %arg5[%c0, %c0_1] : memref<128x128xf32, #tpu.memory_space<vmem>>, vector<128x128xf32>
    %c0_2 = arith.constant 0 : index
    %c0_3 = arith.constant 0 : index
    %4 = vector.load %arg2[%c0_2, %c0_3] : memref<128x128xbf16, #tpu.memory_space<vmem>>, vector<128x128xbf16>
    %c0_4 = arith.constant 0 : index
    %c0_5 = arith.constant 0 : index
    %5 = vector.load %arg3[%c0_4, %c0_5] : memref<128x128xbf16, #tpu.memory_space<vmem>>, vector<128x128xbf16>
    %cst = arith.constant dense<0.000000e+00> : vector<128x128xf32>
    %6 = tpu.matmul %4, %5, %cst {dimension_numbers = #tpu.dot_dimension_numbers<[1], [0], [0], [1], [0, 0, 1, 1], [], []>} : vector<128x128xbf16>, vector<128x128xbf16>, vector<128x128xf32> -> vector<128x128xf32>
    %7 = arith.addf %3, %6 : vector<128x128xf32>
    %c0_6 = arith.constant 0 : index
    %c0_7 = arith.constant 0 : index
    %8 = vector.load %arg5[%c0_6, %c0_7] : memref<128x128xf32, #tpu.memory_space<vmem>>, vector<128x128xf32>
    tpu.vector_store %arg5[%c0_6, %c0_7], %7 {strides = array<i32>} : memref<128x128xf32, #tpu.memory_space<vmem>>, vector<128x128xf32>,
    %c2_i32 = arith.constant 2 : i32
    %9 = arith.cmpi eq, %arg1, %c2_i32 : i32
    %10 = arith.extui %9 : i1 to i32
    %c0_i32_8 = arith.constant 0 : i32
    %11 = arith.cmpi ne, %10, %c0_i32_8 : i32
    scf.if %11 {
      %c0_9 = arith.constant 0 : index
      %c0_10 = arith.constant 0 : index
      %12 = vector.load %arg5[%c0_9, %c0_10] : memref<128x128xf32, #tpu.memory_space<vmem>>, vector<128x128xf32>
      %13 = arith.truncf %12 : vector<128x128xf32> to vector<128x128xbf16>
      %c0_11 = arith.constant 0 : index
      %c0_12 = arith.constant 0 : index
      %14 = vector.load %arg4[%c0_11, %c0_12] : memref<128x128xbf16, #tpu.memory_space<vmem>>, vector<128x128xbf16>
      tpu.vector_store %arg4[%c0_11, %c0_12], %13 {strides = array<i32>} : memref<128x128xbf16, #tpu.memory_space<vmem>>, vector<128x128xbf16>,
    } else {
    }
    return
  }
  func.func @transform_0(%arg0: i32, %arg1: i32) -> (i32, i32) {
    %c0_i32 = arith.constant 0 : i32
    return %arg0, %arg1 : i32, i32
  }
  func.func @transform_1(%arg0: i32, %arg1: i32) -> (i32, i32) {
    %c0_i32 = arith.constant 0 : i32
    %c0_i32_0 = arith.constant 0 : i32
    return %arg1, %c0_i32 : i32, i32
  }
  func.func @transform_2(%arg0: i32, %arg1: i32) -> (i32, i32) {
    %c0_i32 = arith.constant 0 : i32
    %c0_i32_0 = arith.constant 0 : i32
    return %arg0, %c0_i32 : i32, i32
  }
}

module attributes {stable_mosaic.version = 11 : i64} {
  func.func @_hop2_epilogue_kernel(%arg0: i32, %arg1: i32, %arg2: memref<128x128xbf16, #tpu.memory_space<vmem>>, %arg3: memref<128x128xbf16, #tpu.memory_space<vmem>>, %arg4: memref<128x128xbf16, #tpu.memory_space<vmem>>, %arg5: memref<128x128xbf16, #tpu.memory_space<vmem>>, %arg6: memref<384x128xbf16, #tpu.memory_space<vmem>>, %arg7: memref<1x128xf32, #tpu.memory_space<vmem>>, %arg8: memref<128x128xf32, #tpu.memory_space<vmem>>, %arg9: memref<128x128xf32, #tpu.memory_space<vmem>>, %arg10: memref<128x384xbf16, #tpu.memory_space<vmem>>) attributes {dimension_semantics = [#tpu.dimension_semantics<parallel>, #tpu.dimension_semantics<arbitrary>], iteration_bounds = array<i64: 3, 3>, scalar_prefetch = 0 : i64, scratch_operands = 2 : i64, tpu.core_type = #tpu.core_type<tc>, window_params = [{transform_indices = @transform_0, window_bounds = array<i64: 128, 128>}, {transform_indices = @transform_1, window_bounds = array<i64: 128, 128>}, {transform_indices = @transform_2, window_bounds = array<i64: 128, 128>}, {transform_indices = @transform_3, window_bounds = array<i64: 128, 128>}, {pipeline_mode = #tpu.pipeline_mode<synchronous>, transform_indices = @transform_4, window_bounds = array<i64: 384, 128>}, {pipeline_mode = #tpu.pipeline_mode<synchronous>, transform_indices = @transform_5, window_bounds = array<i64: 1, 128>}, {transform_indices = @transform_6, window_bounds = array<i64: 128, 128>}]} {
    %c0_i32 = arith.constant 0 : i32
    %0 = arith.cmpi eq, %arg1, %c0_i32 : i32
    %1 = arith.extui %0 : i1 to i32
    %c0_i32_0 = arith.constant 0 : i32
    %2 = arith.cmpi ne, %1, %c0_i32_0 : i32
    scf.if %2 {
      %cst_9 = arith.constant 0.000000e+00 : f32
      %12 = vector.broadcast %cst_9 : f32 to vector<128x128xf32>
      %c0_10 = arith.constant 0 : index
      %c0_11 = arith.constant 0 : index
      %13 = vector.load %arg9[%c0_10, %c0_11] : memref<128x128xf32, #tpu.memory_space<vmem>>, vector<128x128xf32>
      tpu.vector_store %arg9[%c0_10, %c0_11], %12 {strides = array<i32>} : memref<128x128xf32, #tpu.memory_space<vmem>>, vector<128x128xf32>,
    } else {
    }
    %c0 = arith.constant 0 : index
    %c0_1 = arith.constant 0 : index
    %3 = vector.load %arg9[%c0, %c0_1] : memref<128x128xf32, #tpu.memory_space<vmem>>, vector<128x128xf32>
    %c0_2 = arith.constant 0 : index
    %c0_3 = arith.constant 0 : index
    %4 = vector.load %arg2[%c0_2, %c0_3] : memref<128x128xbf16, #tpu.memory_space<vmem>>, vector<128x128xbf16>
    %c0_4 = arith.constant 0 : index
    %c0_5 = arith.constant 0 : index
    %5 = vector.load %arg3[%c0_4, %c0_5] : memref<128x128xbf16, #tpu.memory_space<vmem>>, vector<128x128xbf16>
    %cst = arith.constant dense<0.000000e+00> : vector<128x128xf32>
    %6 = tpu.matmul %4, %5, %cst {dimension_numbers = #tpu.dot_dimension_numbers<[1], [0], [0], [1], [0, 0, 1, 1], [], []>} : vector<128x128xbf16>, vector<128x128xbf16>, vector<128x128xf32> -> vector<128x128xf32>
    %7 = arith.addf %3, %6 : vector<128x128xf32>
    %c0_6 = arith.constant 0 : index
    %c0_7 = arith.constant 0 : index
    %8 = vector.load %arg9[%c0_6, %c0_7] : memref<128x128xf32, #tpu.memory_space<vmem>>, vector<128x128xf32>
    tpu.vector_store %arg9[%c0_6, %c0_7], %7 {strides = array<i32>} : memref<128x128xf32, #tpu.memory_space<vmem>>, vector<128x128xf32>,
    %c2_i32 = arith.constant 2 : i32
    %9 = arith.cmpi eq, %arg1, %c2_i32 : i32
    %10 = arith.extui %9 : i1 to i32
    %c0_i32_8 = arith.constant 0 : i32
    %11 = arith.cmpi ne, %10, %c0_i32_8 : i32
    scf.if %11 {
      %c0_9 = arith.constant 0 : index
      %c0_10 = arith.constant 0 : index
      %12 = vector.load %arg4[%c0_9, %c0_10] : memref<128x128xbf16, #tpu.memory_space<vmem>>, vector<128x128xbf16>
      %cst_11 = arith.constant 0.000000e+00 : bf16
      %13 = vector.broadcast %cst_11 : bf16 to vector<128x128xbf16>
      %14 = arith.maximumf %12, %13 : vector<128x128xbf16>
      %c0_12 = arith.constant 0 : index
      %c0_13 = arith.constant 0 : index
      %15 = vector.load %arg5[%c0_12, %c0_13] : memref<128x128xbf16, #tpu.memory_space<vmem>>, vector<128x128xbf16>
      %cst_14 = arith.constant 0.000000e+00 : bf16
      %16 = vector.broadcast %cst_14 : bf16 to vector<128x128xbf16>
      %17 = arith.maximumf %15, %16 : vector<128x128xbf16>
      %c0_15 = arith.constant 0 : index
      %c0_16 = arith.constant 0 : index
      %18 = vector.load %arg9[%c0_15, %c0_16] : memref<128x128xf32, #tpu.memory_space<vmem>>, vector<128x128xf32>
      %cst_17 = arith.constant 0.000000e+00 : f32
      %19 = vector.broadcast %cst_17 : f32 to vector<128x128xf32>
      %20 = arith.maximumf %18, %19 : vector<128x128xf32>
      %c0_18 = arith.constant 0 : index
      %c0_19 = arith.constant 0 : index
      %21 = vector.load %arg10[%c0_18, %c0_19] : memref<128x384xbf16, #tpu.memory_space<vmem>>, vector<128x128xbf16>
      tpu.vector_store %arg10[%c0_18, %c0_19], %14 {strides = array<i32>} : memref<128x384xbf16, #tpu.memory_space<vmem>>, vector<128x128xbf16>,
      %c0_20 = arith.constant 0 : index
      %c128 = arith.constant 128 : index
      %22 = vector.load %arg10[%c0_20, %c128] : memref<128x384xbf16, #tpu.memory_space<vmem>>, vector<128x128xbf16>
      tpu.vector_store %arg10[%c0_20, %c128], %17 {strides = array<i32>} : memref<128x384xbf16, #tpu.memory_space<vmem>>, vector<128x128xbf16>,
      %23 = arith.truncf %20 : vector<128x128xf32> to vector<128x128xbf16>
      %c0_21 = arith.constant 0 : index
      %c256 = arith.constant 256 : index
      %24 = vector.load %arg10[%c0_21, %c256] : memref<128x384xbf16, #tpu.memory_space<vmem>>, vector<128x128xbf16>
      tpu.vector_store %arg10[%c0_21, %c256], %23 {strides = array<i32>} : memref<128x384xbf16, #tpu.memory_space<vmem>>, vector<128x128xbf16>,
      %c0_22 = arith.constant 0 : index
      %c0_23 = arith.constant 0 : index
      %25 = vector.load %arg10[%c0_22, %c0_23] : memref<128x384xbf16, #tpu.memory_space<vmem>>, vector<128x384xbf16>
      %c0_24 = arith.constant 0 : index
      %c0_25 = arith.constant 0 : index
      %26 = vector.load %arg6[%c0_24, %c0_25] : memref<384x128xbf16, #tpu.memory_space<vmem>>, vector<384x128xbf16>
      %cst_26 = arith.constant dense<0.000000e+00> : vector<128x128xf32>
      %27 = tpu.matmul %25, %26, %cst_26 {dimension_numbers = #tpu.dot_dimension_numbers<[1], [0], [0], [1], [0, 0, 1, 1], [], []>} : vector<128x384xbf16>, vector<384x128xbf16>, vector<128x128xf32> -> vector<128x128xf32>
      %c0_27 = arith.constant 0 : index
      %c0_28 = arith.constant 0 : index
      %28 = vector.load %arg7[%c0_27, %c0_28] : memref<1x128xf32, #tpu.memory_space<vmem>>, vector<1x128xf32>
      %29 = vector.broadcast %28 : vector<1x128xf32> to vector<128x128xf32>
      %30 = arith.addf %27, %29 : vector<128x128xf32>
      %31 = tpu.iota {dimensions = array<i32: 1>} : vector<128x128xi32>
      %c7_i32 = arith.constant 7 : i32
      %32 = vector.broadcast %c7_i32 : i32 to vector<128x128xi32>
      %33 = arith.cmpi slt, %31, %32 : vector<128x128xi32>
      %cst_29 = arith.constant -1.000000e+30 : f32
      %34 = vector.broadcast %cst_29 : f32 to vector<128x128xf32>
      %35 = arith.select %33, %30, %34 : vector<128x128xi1>, vector<128x128xf32>
      %cst_30 = arith.constant dense<0xFF800000> : vector<128xf32>
      %36 = vector.multi_reduction <maximumf>, %35, %cst_30 [1] : vector<128x128xf32> to vector<128xf32>
      %37 = vector.shape_cast %36 : vector<128xf32> to vector<128x1xf32>
      %38 = vector.broadcast %37 : vector<128x1xf32> to vector<128x128xf32>
      %39 = arith.subf %35, %38 : vector<128x128xf32>
      %40 = math.exp %39 : vector<128x128xf32>
      %cst_31 = arith.constant dense<0.000000e+00> : vector<128xf32>
      %41 = vector.multi_reduction <add>, %40, %cst_31 [1] : vector<128x128xf32> to vector<128xf32>
      %42 = vector.shape_cast %41 : vector<128xf32> to vector<128x1xf32>
      %43 = math.log %42 : vector<128x1xf32>
      %44 = vector.broadcast %43 : vector<128x1xf32> to vector<128x128xf32>
      %45 = arith.subf %39, %44 : vector<128x128xf32>
      %c0_32 = arith.constant 0 : index
      %c0_33 = arith.constant 0 : index
      %46 = vector.load %arg8[%c0_32, %c0_33] : memref<128x128xf32, #tpu.memory_space<vmem>>, vector<128x128xf32>
      tpu.vector_store %arg8[%c0_32, %c0_33], %45 {strides = array<i32>} : memref<128x128xf32, #tpu.memory_space<vmem>>, vector<128x128xf32>,
    } else {
    }
    return
  }
  func.func @transform_0(%arg0: i32, %arg1: i32) -> (i32, i32) {
    %c0_i32 = arith.constant 0 : i32
    return %arg0, %arg1 : i32, i32
  }
  func.func @transform_1(%arg0: i32, %arg1: i32) -> (i32, i32) {
    %c0_i32 = arith.constant 0 : i32
    %c0_i32_0 = arith.constant 0 : i32
    return %arg1, %c0_i32 : i32, i32
  }
  func.func @transform_2(%arg0: i32, %arg1: i32) -> (i32, i32) {
    %c0_i32 = arith.constant 0 : i32
    %c0_i32_0 = arith.constant 0 : i32
    return %arg0, %c0_i32 : i32, i32
  }
  func.func @transform_3(%arg0: i32, %arg1: i32) -> (i32, i32) {
    %c0_i32 = arith.constant 0 : i32
    %c0_i32_0 = arith.constant 0 : i32
    return %arg0, %c0_i32 : i32, i32
  }
  func.func @transform_4(%arg0: i32, %arg1: i32) -> (i32, i32) {
    %c0_i32 = arith.constant 0 : i32
    %c0_i32_0 = arith.constant 0 : i32
    %c0_i32_1 = arith.constant 0 : i32
    return %c0_i32, %c0_i32_0 : i32, i32
  }
  func.func @transform_5(%arg0: i32, %arg1: i32) -> (i32, i32) {
    %c0_i32 = arith.constant 0 : i32
    %c0_i32_0 = arith.constant 0 : i32
    %c0_i32_1 = arith.constant 0 : i32
    return %c0_i32, %c0_i32_0 : i32, i32
  }
  func.func @transform_6(%arg0: i32, %arg1: i32) -> (i32, i32) {
    %c0_i32 = arith.constant 0 : i32
    %c0_i32_0 = arith.constant 0 : i32
    return %arg0, %c0_i32 : i32, i32
  }
}

</mosaic_0001>

<llo_original>
// kernel: mixhop_forward.3
$region0: #{mixhop_forward.3}
  #allocation0 [shape = 'u32[]', space=smem, size = 0x4, offset = 0x4, fixed_abs, tag = 'smem constant byte address 0x4 - core index']
  #allocation1 [shape = 'u32[72,128]{1,0:T(1,128)}', space=vmem, size = 0x9000, scoped, tag = 'internal scratch']
  %s0 = inlined_call_operand.vmem [shape: bf16[384,128], index: 0, kind: input, shape index: {}]
  %s1 = inlined_call_operand.vmem [shape: bf16[128,128], index: 1, kind: input, shape index: {}]
  %s2 = inlined_call_operand.vmem [shape: f32[1,128], index: 2, kind: input, shape index: {}]
  %s3 = inlined_call_operand.vmem [shape: bf16[384,128], index: 3, kind: output, shape index: {}]
  %s4 = sld [smem:[#allocation0]]
  $region45: #{mixhop_forward.3} parent=0
    _
  %s6 = ssub.s32 1, %s4
  %s7 = scalar_select 0, %s6, %s4
  loop: start=0, step=1, limit=5
  $region2: #{mixhop_forward.3} parent=0 // loop_pre_header
    _
  $region3: #{mixhop_forward.3} parent=0 // loop_header
    %s9 = sphi 0, %s13
    %p10 = scmp.ge.s32.totalorder %s9, 5
    %s19 = sphi 0, %s21
    %s22 = sphi 0, %s19
    %s23 = sphi 0, %s22
    %s39 = sphi 0, %s23
    %s43 = sphi 0, %s43
    %s45 = sphi 0, %s43
    %s46 = sphi 0, %s45
    %s60 = sphi 0, %s46
    %s64 = sphi 0, %s64
    %s66 = sphi 0, %s64
    %s67 = sphi 0, %s66
    %s81 = sphi 0, %s67
    %s87 = sphi 0, %s89
    %s90 = sphi 0, %s87
    %s91 = sphi 0, %s90
    %s107 = sphi 0, %s91
  $region4: #{mixhop_forward.3} parent=0 // loop_header_branch
    %12 = sbr.rel (%p10) target = $region8
  $region5: #{mixhop_forward.3} parent=0 // loop_body
    %s14 = ssub.s32 %s9, 1
    %s15 = ssub.s32 %s9, 2
    %s16 = sadd.s32 %s9, 1
    %s17 = ssub.s32 %s9, %s16
    %p18 = scmp.eq.s32.totalorder %s17, 0
    %s20 = sadd.s32 %s19, 1
    %s21 = scalar_select %p18, %s19, %s20
    %p24 = pneg %p18
    %p25 = scmp.eq.s32.totalorder %s9, 2
    %p26 = por %p24, %p25
    %p27 = scmp.ne.s32.totalorder %s19, %s22
    %p28 = scmp.eq.s32.totalorder %s9, 0
    %p29 = por %p27, %p28
    %p30 = scmp.ne.s32.totalorder %s19, %s22
    %p31 = scmp.eq.s32.totalorder %s14, 2
    %p32 = por %p30, %p31
    %p33 = scmp.ne.s32.totalorder %s22, %s23
    %p34 = scmp.eq.s32.totalorder %s14, 0
    %p35 = por %p33, %p34
    %p36 = scmp.ne.s32.totalorder %s22, %s23
    %p37 = scmp.eq.s32.totalorder %s15, 2
    %p38 = por %p36, %p37
    %p40 = scmp.ne.s32.totalorder %s23, %s39
    %p41 = scmp.eq.s32.totalorder %s15, 0
    %p42 = por %p40, %p41
    %s44 = sadd.s32 %s43, 1
    %p47 = scmp.eq.s32.totalorder %s9, 2
    %p48 = scmp.ne.s32.totalorder %s43, %s45
    %p49 = scmp.eq.s32.totalorder %s9, 0
    %p50 = por %p48, %p49
    %p51 = scmp.ne.s32.totalorder %s43, %s45
    %p52 = scmp.eq.s32.totalorder %s14, 2
    %p53 = por %p51, %p52
    %p54 = scmp.ne.s32.totalorder %s45, %s46
    %p55 = scmp.eq.s32.totalorder %s14, 0
    %p56 = por %p54, %p55
    %p57 = scmp.ne.s32.totalorder %s45, %s46
    %p58 = scmp.eq.s32.totalorder %s15, 2
    %p59 = por %p57, %p58
    %p61 = scmp.ne.s32.totalorder %s46, %s60
    %p62 = scmp.eq.s32.totalorder %s15, 0
    %p63 = por %p61, %p62
    %s65 = sadd.s32 %s64, 1
    %p68 = scmp.eq.s32.totalorder %s9, 2
    %p69 = scmp.ne.s32.totalorder %s64, %s66
    %p70 = scmp.eq.s32.totalorder %s9, 0
    %p71 = por %p69, %p70
    %p72 = scmp.ne.s32.totalorder %s64, %s66
    %p73 = scmp.eq.s32.totalorder %s14, 2
    %p74 = por %p72, %p73
    %p75 = scmp.ne.s32.totalorder %s66, %s67
    %p76 = scmp.eq.s32.totalorder %s14, 0
    %p77 = por %p75, %p76
    %p78 = scmp.ne.s32.totalorder %s66, %s67
    %p79 = scmp.eq.s32.totalorder %s15, 2
    %p80 = por %p78, %p79
    %p82 = scmp.ne.s32.totalorder %s67, %s81
    %p83 = scmp.eq.s32.totalorder %s15, 0
    %p84 = por %p82, %p83
    %s85 = ssub.s32 %s9, %s16
    %p86 = scmp.eq.s32.totalorder %s85, 0
    %s88 = sadd.s32 %s87, 1
    %s89 = scalar_select %p86, %s87, %s88
    %p92 = pneg %p86
    %p93 = scmp.eq.s32.totalorder %s9, 2
    %p94 = por %p92, %p93
    %p95 = scmp.ne.s32.totalorder %s87, %s90
    %p96 = scmp.eq.s32.totalorder %s9, 0
    %p97 = por %p95, %p96
    %p98 = scmp.ne.s32.totalorder %s87, %s90
    %p99 = scmp.eq.s32.totalorder %s14, 2
    %p100 = por %p98, %p99
    %p101 = scmp.ne.s32.totalorder %s90, %s91
    %p102 = scmp.eq.s32.totalorder %s14, 0
    %p103 = por %p101, %p102
    %p104 = scmp.ne.s32.totalorder %s90, %s91
    %p105 = scmp.eq.s32.totalorder %s15, 2
    %p106 = por %p104, %p105
    %p108 = scmp.ne.s32.totalorder %s91, %s107
    %p109 = scmp.eq.s32.totalorder %s15, 0
    %p110 = por %p108, %p109
    %p111 = scmp.le.s32.totalorder 1, %s9
    %p112 = scmp.lt.s32.totalorder %s9, 4
    %p113 = pnand %p111, %p112
    %p114 = pneg %p113
    // Predicated region
    $region9: #{mixhop_forward.3} parent=5 // pred_check
      _
    $region10: #{mixhop_forward.3} parent=5 // pred_check_branch
      %116 = sbr.rel (%p113) target = $region12
    $region11: #{mixhop_forward.3} parent=5 // pred_region
      %s117 = ssub.s32 %s9, 1
      // Predicated region
      $region13: #{mixhop_forward.3} parent=11 // pred_check
        %p118 = pneg %p56
      $region14: #{mixhop_forward.3} parent=11 // pred_check_branch
        %120 = sbr.rel (%p118) target = $region16
      $region15: #{mixhop_forward.3} parent=11 // pred_region
        _
      $region16: #{mixhop_forward.3} parent=11 // pred_fallthru
        _
      // Predicated region
      $region17: #{mixhop_forward.3} parent=11 // pred_check
        %p121 = pneg %p77
      $region18: #{mixhop_forward.3} parent=11 // pred_check_branch
        %123 = sbr.rel (%p121) target = $region20
      $region19: #{mixhop_forward.3} parent=11 // pred_region
        _
      $region20: #{mixhop_forward.3} parent=11 // pred_fallthru
        _
    $region12: #{mixhop_forward.3} parent=5 // pred_fallthru
      _
    %p124 = scmp.lt.s32.totalorder %s9, 3
    // Predicated region
    $region21: #{mixhop_forward.3} parent=5 // pred_check
      %p125 = pneg %p124
    $region22: #{mixhop_forward.3} parent=5 // pred_check_branch
      %127 = sbr.rel (%p125) target = $region24
    $region23: #{mixhop_forward.3} parent=5 // pred_region
      // Predicated region
      $region25: #{mixhop_forward.3} parent=23 // pred_check
        %p128 = pneg %p29
      $region26: #{mixhop_forward.3} parent=23 // pred_check_branch
        %130 = sbr.rel (%p128) target = $region28
      $region27: #{mixhop_forward.3} parent=23 // pred_region
        %s131 = smul.u32 16, %s9
        %p132 = scmp.lt.s32.totalorder %s131, 47
        %s133 = scalar_select %p132, %s131, 47
        %s134 = smul.addr %s133, 4
        %s135 = scalar_lea.vmem %s0, %s134
        %s136 = smul.u32 16, %s9
      $region28: #{mixhop_forward.3} parent=23 // pred_fallthru
        _
    $region24: #{mixhop_forward.3} parent=5 // pred_fallthru
      _
    %p137 = scmp.le.s32.totalorder 1, %s9
    %p138 = scmp.lt.s32.totalorder %s9, 4
    %p139 = pnand %p137, %p138
    %p140 = pneg %p139
    // Predicated region
    $region29: #{mixhop_forward.3} parent=5 // pred_check
      _
    $region30: #{mixhop_forward.3} parent=5 // pred_check_branch
      %142 = sbr.rel (%p139) target = $region32
    $region31: #{mixhop_forward.3} parent=5 // pred_region
      %s143 = ssub.s32 %s9, 1
      %s144 = smul.u32 16, %s14
      %p145 = scmp.lt.s32.totalorder %s144, 47
      %s146 = scalar_select %p145, %s144, 47
      %s147 = smul.addr %s146, 4
      %s148 = scalar_lea.vmem %s0, %s147
      %p149 = pneg %p35
      %p150 = pneg %p32
      %p151 = pneg %p56
      %p152 = pneg %p53
      %p153 = pneg %p77
      %p154 = pneg %p74
      %p155 = pneg %p103
      %p156 = pneg %p100
      %s157 = smul.u32 16, %s14
      %p158 = scmp.lt.s32.totalorder %s157, 47
      %s159 = scalar_select %p158, %s157, 47
      %s160 = smul.addr %s159, 4
      %s161 = scalar_lea.vmem %s3, %s160
      %s162 = smul.u32 16, %s14
      %p163 = scmp.lt.s32.totalorder %s162, 47
      %s164 = scalar_select %p163, %s162, 47
      %s165 = smul.addr %s164, 4
      %s166 = scalar_lea.vmem %s0, %s165
      %s167 = smul.u32 16, %s14
      %s168 = smul.u32 16, %s14
      %p169 = scmp.lt.s32.totalorder %s168, 47
      %s170 = scalar_select %p169, %s168, 47
      %s171 = smul.addr %s170, 4
      %s172 = scalar_lea.vmem %s3, %s171
      %s173 = smul.u32 16, %s14
      %v174 = vld [vmem:[%s166] sm:$0xf]
      %v175 = vld [vmem:[%s166 + $0x4] sm:$0xf]
      %v176 = vld [vmem:[%s166 + $0x8] sm:$0xf]
      %v177 = vld [vmem:[%s166 + $0xc] sm:$0xf]
      %v178 = vld [vmem:[%s166 + $0x10] sm:$0xf]
      %v179 = vld [vmem:[%s166 + $0x14] sm:$0xf]
      %v180 = vld [vmem:[%s166 + $0x18] sm:$0xf]
      %v181 = vld [vmem:[%s166 + $0x1c] sm:$0xf]
      %v182 = vld [vmem:[%s166 + $0x20] sm:$0xf]
      %v183 = vld [vmem:[%s166 + $0x24] sm:$0xf]
      %v184 = vld [vmem:[%s166 + $0x28] sm:$0xf]
      %v185 = vld [vmem:[%s166 + $0x2c] sm:$0xf]
      %v186 = vld [vmem:[%s166 + $0x30] sm:$0xf]
      %v187 = vld [vmem:[%s166 + $0x34] sm:$0xf]
      %v188 = vld [vmem:[%s166 + $0x38] sm:$0xf]
      %v189 = vld [vmem:[%s166 + $0x3c] sm:$0xf]
      %v190 = vld [vmem:[%s1] sm:$0xf]
      %v191 = vld [vmem:[%s1 + $0x4] sm:$0xf]
      %v192 = vld [vmem:[%s1 + $0x8] sm:$0xf]
      %v193 = vld [vmem:[%s1 + $0xc] sm:$0xf]
      %v194 = vld [vmem:[%s1 + $0x10] sm:$0xf]
      %v195 = vld [vmem:[%s1 + $0x14] sm:$0xf]
      %v196 = vld [vmem:[%s1 + $0x18] sm:$0xf]
      %v197 = vld [vmem:[%s1 + $0x1c] sm:$0xf]
      %v198 = vld [vmem:[%s1 + $0x20] sm:$0xf]
      %v199 = vld [vmem:[%s1 + $0x24] sm:$0xf]
      %v200 = vld [vmem:[%s1 + $0x28] sm:$0xf]
      %v201 = vld [vmem:[%s1 + $0x2c] sm:$0xf]
      %v202 = vld [vmem:[%s1 + $0x30] sm:$0xf]
      %v203 = vld [vmem:[%s1 + $0x34] sm:$0xf]
      %v204 = vld [vmem:[%s1 + $0x38] sm:$0xf]
      %v205 = vld [vmem:[%s1 + $0x3c] sm:$0xf]
      %v206 = vld [vmem:[%s2] sm:$0x1]
      %v208 = vperm.slane %v206, 0
      %v226 = vunpack.c.l.b16 %v174
      %v227 = vunpack.c.l.b16 %v175
      %v228 = vunpack.c.l.b16 %v176
      %v229 = vunpack.c.l.b16 %v177
      %v230 = vunpack.c.l.b16 %v178
      %v231 = vunpack.c.l.b16 %v179
      %v232 = vunpack.c.l.b16 %v180
      %v233 = vunpack.c.l.b16 %v181
      %v234 = vunpack.c.l.b16 %v182
      %v235 = vunpack.c.l.b16 %v183
      %v236 = vunpack.c.l.b16 %v184
      %v237 = vunpack.c.l.b16 %v185
      %v238 = vunpack.c.l.b16 %v186
      %v239 = vunpack.c.l.b16 %v187
      %v240 = vunpack.c.l.b16 %v188
      %v241 = vunpack.c.l.b16 %v189
      %v242 = vpack.c.b16 %v227, %v226
      %v243 = vpack.c.b16 %v229, %v228
      %v244 = vpack.c.b16 %v231, %v230
      %v245 = vpack.c.b16 %v233, %v232
      %v246 = vpack.c.b16 %v235, %v234
      %v247 = vpack.c.b16 %v237, %v236
      %v248 = vpack.c.b16 %v239, %v238
      %v249 = vpack.c.b16 %v241, %v240
      %v274 = vunpack.c.l.b16 %v190
      %v275 = vunpack.c.l.b16 %v191
      %v276 = vunpack.c.l.b16 %v192
      %v277 = vunpack.c.l.b16 %v193
      %v278 = vunpack.c.l.b16 %v194
      %v279 = vunpack.c.l.b16 %v195
      %v280 = vunpack.c.l.b16 %v196
      %v281 = vunpack.c.l.b16 %v197
      %v282 = vunpack.c.l.b16 %v198
      %v283 = vunpack.c.l.b16 %v199
      %v284 = vunpack.c.l.b16 %v200
      %v285 = vunpack.c.l.b16 %v201
      %v286 = vunpack.c.l.b16 %v202
      %v287 = vunpack.c.l.b16 %v203
      %v288 = vunpack.c.l.b16 %v204
      %v289 = vunpack.c.l.b16 %v205
      %v290 = vpack.c.b16 %v275, %v274
      %v291 = vpack.c.b16 %v277, %v276
      %v292 = vpack.c.b16 %v279, %v278
      %v293 = vpack.c.b16 %v281, %v280
      %v294 = vpack.c.b16 %v283, %v282
      %v295 = vpack.c.b16 %v285, %v284
      %v296 = vpack.c.b16 %v287, %v286
      %v297 = vpack.c.b16 %v289, %v288
      %306 = vmatpush.bf16.msra.mxu0 %v297
      %307 = vmatpush.bf16.msra.mxu0 %v296
      %308 = vmatpush.bf16.msra.mxu0 %v295
      %309 = vmatpush.bf16.msra.mxu0 %v294
      %310 = vmatpush.bf16.msra.mxu0 %v293
      %311 = vmatpush.bf16.msra.mxu0 %v292
      %312 = vmatpush.bf16.msra.mxu0 %v291
      %313 = vmatpush.bf16.msra.mxu0 %v290
      %314 = vmatmul.bf16.gmra.mxu0 %v242
      %v315 = vpop.f32.mrf.mxu0
      %v316 = vadd.f32 %v208, %v315
      %v317 = vpop.f32.mrf.mxu0
      %v318 = vadd.f32 %v208, %v317
      %319 = vmatmul.bf16.gmra.mxu0 %v243
      %v320 = vpop.f32.mrf.mxu0
      %v321 = vadd.f32 %v208, %v320
      %v322 = vpop.f32.mrf.mxu0
      %v323 = vadd.f32 %v208, %v322
      %324 = vmatmul.bf16.gmra.mxu0 %v244
      %v325 = vpop.f32.mrf.mxu0
      %v326 = vadd.f32 %v208, %v325
      %v327 = vpop.f32.mrf.mxu0
      %v328 = vadd.f32 %v208, %v327
      %329 = vmatmul.bf16.gmra.mxu0 %v245
      %v330 = vpop.f32.mrf.mxu0
      %v331 = vadd.f32 %v208, %v330
      %v332 = vpop.f32.mrf.mxu0
      %v333 = vadd.f32 %v208, %v332
      %334 = vmatmul.bf16.gmra.mxu0 %v246
      %v335 = vpop.f32.mrf.mxu0
      %v336 = vadd.f32 %v208, %v335
      %v337 = vpop.f32.mrf.mxu0
      %v338 = vadd.f32 %v208, %v337
      %339 = vmatmul.bf16.gmra.mxu0 %v247
      %v340 = vpop.f32.mrf.mxu0
      %v341 = vadd.f32 %v208, %v340
      %v342 = vpop.f32.mrf.mxu0
      %v343 = vadd.f32 %v208, %v342
      %344 = vmatmul.bf16.gmra.mxu0 %v248
      %v345 = vpop.f32.mrf.mxu0
      %v346 = vadd.f32 %v208, %v345
      %v347 = vpop.f32.mrf.mxu0
      %v348 = vadd.f32 %v208, %v347
      %349 = vmatmul.bf16.gmra.mxu0 %v249
      %v350 = vpop.f32.mrf.mxu0
      %v351 = vadd.f32 %v208, %v350
      %v352 = vpop.f32.mrf.mxu0
      %v353 = vadd.f32 %v208, %v352
      %354 = vdwg.mxu0
      %v355 = vpack.c.bf16 %v316, %v316
      %v356 = vpack.c.bf16 %v318, %v318
      %v357 = vpack.c.bf16 %v321, %v321
      %v358 = vpack.c.bf16 %v323, %v323
      %v359 = vpack.c.bf16 %v326, %v326
      %v360 = vpack.c.bf16 %v328, %v328
      %v361 = vpack.c.bf16 %v331, %v331
      %v362 = vpack.c.bf16 %v333, %v333
      %v363 = vpack.c.bf16 %v336, %v336
      %v364 = vpack.c.bf16 %v338, %v338
      %v365 = vpack.c.bf16 %v341, %v341
      %v366 = vpack.c.bf16 %v343, %v343
      %v367 = vpack.c.bf16 %v346, %v346
      %v368 = vpack.c.bf16 %v348, %v348
      %v369 = vpack.c.bf16 %v351, %v351
      %v370 = vpack.c.bf16 %v353, %v353
      %371 = vst [vmem:[%s172] sm:$0xf] %v355
      %372 = vst [vmem:[%s172 + $0x4] sm:$0xf] %v356
      %373 = vst [vmem:[%s172 + $0x8] sm:$0xf] %v357
      %374 = vst [vmem:[%s172 + $0xc] sm:$0xf] %v358
      %375 = vst [vmem:[%s172 + $0x10] sm:$0xf] %v359
      %376 = vst [vmem:[%s172 + $0x14] sm:$0xf] %v360
      %377 = vst [vmem:[%s172 + $0x18] sm:$0xf] %v361
      %378 = vst [vmem:[%s172 + $0x1c] sm:$0xf] %v362
      %379 = vst [vmem:[%s172 + $0x20] sm:$0xf] %v363
      %380 = vst [vmem:[%s172 + $0x24] sm:$0xf] %v364
      %381 = vst [vmem:[%s172 + $0x28] sm:$0xf] %v365
      %382 = vst [vmem:[%s172 + $0x2c] sm:$0xf] %v366
      %383 = vst [vmem:[%s172 + $0x30] sm:$0xf] %v367
      %384 = vst [vmem:[%s172 + $0x34] sm:$0xf] %v368
      %385 = vst [vmem:[%s172 + $0x38] sm:$0xf] %v369
      %386 = vst [vmem:[%s172 + $0x3c] sm:$0xf] %v370
      %s387 = smul.u32 16, %s14
      %p388 = scmp.lt.s32.totalorder %s387, 47
      %s389 = scalar_select %p388, %s387, 47
      %s390 = smul.addr %s389, 4
      %s391 = scalar_lea.vmem %s3, %s390
      // Predicated region
      $region33: #{mixhop_forward.3} parent=31 // pred_check
        %p392 = pneg %p100
      $region34: #{mixhop_forward.3} parent=31 // pred_check_branch
        %394 = sbr.rel (%p392) target = $region36
      $region35: #{mixhop_forward.3} parent=31 // pred_region
        %s395 = smul.u32 16, %s14
      $region36: #{mixhop_forward.3} parent=31 // pred_fallthru
        _
    $region32: #{mixhop_forward.3} parent=5 // pred_fallthru
      _
    %p396 = scmp.le.s32.totalorder 2, %s9
    // Predicated region
    $region37: #{mixhop_forward.3} parent=5 // pred_check
      %p397 = pneg %p396
    $region38: #{mixhop_forward.3} parent=5 // pred_check_branch
      %399 = sbr.rel (%p397) target = $region40
    $region39: #{mixhop_forward.3} parent=5 // pred_region
      %s400 = ssub.s32 %s9, 2
      // Predicated region
      $region41: #{mixhop_forward.3} parent=39 // pred_check
        %p401 = pneg %p106
      $region42: #{mixhop_forward.3} parent=39 // pred_check_branch
        %403 = sbr.rel (%p401) target = $region44
      $region43: #{mixhop_forward.3} parent=39 // pred_region
        %s404 = smul.u32 16, %s15
        %p405 = scmp.lt.s32.totalorder %s404, 47
        %s406 = scalar_select %p405, %s404, 47
        %s407 = smul.addr %s406, 4
        %s408 = scalar_lea.vmem %s3, %s407
      $region44: #{mixhop_forward.3} parent=39 // pred_fallthru
        _
    $region40: #{mixhop_forward.3} parent=5 // pred_fallthru
      _
  $region6: #{mixhop_forward.3} parent=0 // loop_footer
    %s13 = sadd.s32 1, %s9
  $region7: #{mixhop_forward.3} parent=0 // loop_footer_branch
    %8 = sbr.rel target = $region3
  $region8: #{mixhop_forward.3} parent=0 // loop_exit
    _

// kernel: mixhop_forward.4
$region0: #{mixhop_forward.4}
  #allocation0 [shape = 'u32[]', space=smem, size = 0x4, offset = 0x4, fixed_abs, tag = 'smem constant byte address 0x4 - core index']
  #allocation1 [shape = 'u32[72,128]{1,0:T(1,128)}', space=vmem, size = 0x9000, scoped, tag = 'internal scratch']
  #allocation2 [shape = 'f32[128,128]{1,0:T(8,128)}', space=vmem, size = 0x10000, scoped, tag = 'scratch operand']
  %s0 = inlined_call_operand.vmem [shape: bf16[384,384], index: 0, kind: input, shape index: {}]
  %s1 = inlined_call_operand.vmem [shape: bf16[384,128], index: 1, kind: input, shape index: {}]
  %s2 = inlined_call_operand.vmem [shape: bf16[384,128], index: 2, kind: output, shape index: {}]
  %s3 = sld [smem:[#allocation0]]
  $region90: #{mixhop_forward.4} parent=0
    _
  %s5 = ssub.s32 1, %s3
  %s6 = scalar_select 0, %s5, %s3
  $region1: #{mixhop_forward.4} parent=0
    #allocation3 [shape = 'u8[65536]{0}', space=vmem, size = 0x10000, scoped, tag = 'input window, operand 0']
    loop: start=0, step=1, limit=11
    $region2: #{mixhop_forward.4} parent=1 // loop_pre_header
      _
    $region3: #{mixhop_forward.4} parent=1 // loop_header
      %s8 = sphi 0, %s12
      %p9 = scmp.ge.s32.totalorder %s8, 11
      %s15 = sphi 0, %s27
      %s16 = sphi 0, %s23
      %s17 = sphi 0, %s15
      %s18 = sphi 0, %s16
      %s19 = sphi 0, %s17
      %s20 = sphi 0, %s18
      %s32 = sphi 0, %s34
      %s35 = sphi 0, %s32
      %s36 = sphi 0, %s35
      %s52 = sphi 0, %s36
      %s58 = sphi 0, %s60
      %s61 = sphi 0, %s58
      %s62 = sphi 0, %s61
      %s78 = sphi 0, %s62
      %s84 = sphi 0, %s86
      %s87 = sphi 0, %s84
      %s88 = sphi 0, %s87
      %s104 = sphi 0, %s88
    $region4: #{mixhop_forward.4} parent=1 // loop_header_branch
      %11 = sbr.rel (%p9) target = $region8
    $region5: #{mixhop_forward.4} parent=1 // loop_body
      %s13 = ssub.s32 %s8, 1
      %s14 = ssub.s32 %s8, 2
      %s21 = sadd.s32 1, %s16
      %p22 = scmp.ge.s32.totalorder %s21, 3
      %s23 = scalar_select %p22, 0, %s21
      %s24 = sadd.s32 1, %s15
      %s25 = scalar_select %p22, %s24, %s15
      %p26 = scmp.ge.s32.totalorder %s25, 3
      %s27 = scalar_select %p26, 0, %s25
      %s28 = ssub.s32 %s15, %s27
      %s29 = ssub.s32 %s16, %s23
      %s30 = sor.u32 %s28, %s29
      %p31 = scmp.eq.s32.totalorder %s30, 0
      %s33 = sadd.s32 %s32, 1
      %s34 = scalar_select %p31, %s32, %s33
      %p37 = pneg %p31
      %p38 = scmp.eq.s32.totalorder %s8, 8
      %p39 = por %p37, %p38
      %p40 = scmp.ne.s32.totalorder %s32, %s35
      %p41 = scmp.eq.s32.totalorder %s8, 0
      %p42 = por %p40, %p41
      %p43 = scmp.ne.s32.totalorder %s32, %s35
      %p44 = scmp.eq.s32.totalorder %s13, 8
      %p45 = por %p43, %p44
      %p46 = scmp.ne.s32.totalorder %s35, %s36
      %p47 = scmp.eq.s32.totalorder %s13, 0
      %p48 = por %p46, %p47
      %p49 = scmp.ne.s32.totalorder %s35, %s36
      %p50 = scmp.eq.s32.totalorder %s14, 8
      %p51 = por %p49, %p50
      %p53 = scmp.ne.s32.totalorder %s36, %s52
      %p54 = scmp.eq.s32.totalorder %s14, 0
      %p55 = por %p53, %p54
      %s56 = ssub.s32 %s16, %s23
      %p57 = scmp.eq.s32.totalorder %s56, 0
      %s59 = sadd.s32 %s58, 1
      %s60 = scalar_select %p57, %s58, %s59
      %p63 = pneg %p57
      %p64 = scmp.eq.s32.totalorder %s8, 8
      %p65 = por %p63, %p64
      %p66 = scmp.ne.s32.totalorder %s58, %s61
      %p67 = scmp.eq.s32.totalorder %s8, 0
      %p68 = por %p66, %p67
      %p69 = scmp.ne.s32.totalorder %s58, %s61
      %p70 = scmp.eq.s32.totalorder %s13, 8
      %p71 = por %p69, %p70
      %p72 = scmp.ne.s32.totalorder %s61, %s62
      %p73 = scmp.eq.s32.totalorder %s13, 0
      %p74 = por %p72, %p73
      %p75 = scmp.ne.s32.totalorder %s61, %s62
      %p76 = scmp.eq.s32.totalorder %s14, 8
      %p77 = por %p75, %p76
      %p79 = scmp.ne.s32.totalorder %s62, %s78
      %p80 = scmp.eq.s32.totalorder %s14, 0
      %p81 = por %p79, %p80
      %s82 = ssub.s32 %s15, %s27
      %p83 = scmp.eq.s32.totalorder %s82, 0
      %s85 = sadd.s32 %s84, 1
      %s86 = scalar_select %p83, %s84, %s85
      %p89 = pneg %p83
      %p90 = scmp.eq.s32.totalorder %s8, 8
      %p91 = por %p89, %p90
      %p92 = scmp.ne.s32.totalorder %s84, %s87
      %p93 = scmp.eq.s32.totalorder %s8, 0
      %p94 = por %p92, %p93
      %p95 = scmp.ne.s32.totalorder %s84, %s87
      %p96 = scmp.eq.s32.totalorder %s13, 8
      %p97 = por %p95, %p96
      %p98 = scmp.ne.s32.totalorder %s87, %s88
      %p99 = scmp.eq.s32.totalorder %s13, 0
      %p100 = por %p98, %p99
      %p101 = scmp.ne.s32.totalorder %s87, %s88
      %p102 = scmp.eq.s32.totalorder %s14, 8
      %p103 = por %p101, %p102
      %p105 = scmp.ne.s32.totalorder %s88, %s104
      %p106 = scmp.eq.s32.totalorder %s14, 0
      %p107 = por %p105, %p106
      %p108 = scmp.le.s32.totalorder 1, %s8
      %p109 = scmp.lt.s32.totalorder %s8, 10
      %p110 = pnand %p108, %p109
      %p111 = pneg %p110
      // Predicated region
      $region9: #{mixhop_forward.4} parent=5 // pred_check
        _
      $region10: #{mixhop_forward.4} parent=5 // pred_check_branch
        %113 = sbr.rel (%p110) target = $region12
      $region11: #{mixhop_forward.4} parent=5 // pred_region
        %s114 = ssub.s32 %s8, 1
      $region12: #{mixhop_forward.4} parent=5 // pred_fallthru
        _
      %p115 = scmp.lt.s32.totalorder %s8, 9
      // Predicated region
      $region13: #{mixhop_forward.4} parent=5 // pred_check
        %p116 = pneg %p115
      $region14: #{mixhop_forward.4} parent=5 // pred_check_branch
        %118 = sbr.rel (%p116) target = $region16
      $region15: #{mixhop_forward.4} parent=5 // pred_region
        // Predicated region
        $region17: #{mixhop_forward.4} parent=15 // pred_check
          %p119 = pneg %p42
        $region18: #{mixhop_forward.4} parent=15 // pred_check_branch
          %121 = sbr.rel (%p119) target = $region20
        $region19: #{mixhop_forward.4} parent=15 // pred_region
          %s122 = sand.u32 %s32, 1
          %s123 = sand.u32 %s32, 1
          %s124 = smul.addr %s123, 64
          %s125 = scalar_lea.vmem [#allocation3], %s124
          %s126 = smul.u32 16, %s15
          %s127 = smul.addr %s126, 3
          %s128 = sadd.s32 %s16, %s127
          %s129 = smul.addr %s128, 4
          %s130 = scalar_lea.vmem %s0, %s129
          // Predicated region
          $region21: #{mixhop_forward.4} parent=19 // pred_check
            _
          $region22: #{mixhop_forward.4} parent=19 // pred_check_branch
            %132 = sbr.rel (0) target = $region24
          $region23: #{mixhop_forward.4} parent=19 // pred_region
            // Predicated region
            $region25: #{mixhop_forward.4} parent=23 // pred_check
              _
            $region26: #{mixhop_forward.4} parent=23 // pred_check_branch
              %134 = sbr.rel target = $region28
            $region27: #{mixhop_forward.4} parent=23 // pred_region
              // Predicated region
              $region40: #{mixhop_forward.4} parent=27 // pred_check
                _
              $region41: #{mixhop_forward.4} parent=27 // pred_check_branch
                %180 = sbr.rel (0) target = $region43
              $region42: #{mixhop_forward.4} parent=27 // pred_region
                loop: start=0, step=1, limit=1
                $region44: #{mixhop_forward.4} parent=42 // loop_pre_header
                  _
                $region45: #{mixhop_forward.4} parent=42 // loop_header
                  %s182 = sphi 0, %s186
                  %p183 = scmp.ge.s32.totalorder %s182, 1
                  %s187 = sphi %s130, %s130
                  %s188 = sphi %s125, %s125
                $region46: #{mixhop_forward.4} parent=42 // loop_header_branch
                  %185 = sbr.rel (%p183) target = $region50
                $region47: #{mixhop_forward.4} parent=42 // loop_body
                  _
                $region48: #{mixhop_forward.4} parent=42 // loop_footer
                  %s186 = sadd.s32 1, %s182
                $region49: #{mixhop_forward.4} parent=42 // loop_footer_branch
                  %181 = sbr.rel target = $region45
                $region50: #{mixhop_forward.4} parent=42 // loop_exit
                  _
                %s190 = ssub.s32 16, 1
                loop: start=0, step=1, limit=1
                $region51: #{mixhop_forward.4} parent=42 // loop_pre_header
                  _
                $region52: #{mixhop_forward.4} parent=42 // loop_header
                  %s192 = sphi 0, %s196
                  %p193 = scmp.ge.s32.totalorder %s192, 1
                  %s197 = sphi %s130, %s130
                  %s198 = sphi %s125, %s125
                $region53: #{mixhop_forward.4} parent=42 // loop_header_branch
                  %195 = sbr.rel (%p193) target = $region57
                $region54: #{mixhop_forward.4} parent=42 // loop_body
                  %v199 = vld [vmem:[%s197] sm:%s190]
                  %200 = vst [vmem:[%s198] sm:%s190] %v199
                  %v201 = vld [vmem:[%s197 + $0xc] sm:%s190]
                  %202 = vst [vmem:[%s198 + $0x4] sm:%s190] %v201
                  %v203 = vld [vmem:[%s197 + $0x18] sm:%s190]
                  %204 = vst [vmem:[%s198 + $0x8] sm:%s190] %v203
                  %v205 = vld [vmem:[%s197 + $0x24] sm:%s190]
                  %206 = vst [vmem:[%s198 + $0xc] sm:%s190] %v205
                  %v207 = vld [vmem:[%s197 + $0x30] sm:%s190]
                  %208 = vst [vmem:[%s198 + $0x10] sm:%s190] %v207
                  %v209 = vld [vmem:[%s197 + $0x3c] sm:%s190]
                  %210 = vst [vmem:[%s198 + $0x14] sm:%s190] %v209
                  %v211 = vld [vmem:[%s197 + $0x48] sm:%s190]
                  %212 = vst [vmem:[%s198 + $0x18] sm:%s190] %v211
                  %v213 = vld [vmem:[%s197 + $0x54] sm:%s190]
                  %214 = vst [vmem:[%s198 + $0x1c] sm:%s190] %v213
                  %v215 = vld [vmem:[%s197 + $0x60] sm:%s190]
                  %216 = vst [vmem:[%s198 + $0x20] sm:%s190] %v215
                  %v217 = vld [vmem:[%s197 + $0x6c] sm:%s190]
                  %218 = vst [vmem:[%s198 + $0x24] sm:%s190] %v217
                  %v219 = vld [vmem:[%s197 + $0x78] sm:%s190]
                  %220 = vst [vmem:[%s198 + $0x28] sm:%s190] %v219
                  %v221 = vld [vmem:[%s197 + $0x84] sm:%s190]
                  %222 = vst [vmem:[%s198 + $0x2c] sm:%s190] %v221
                  %v223 = vld [vmem:[%s197 + $0x90] sm:%s190]
                  %224 = vst [vmem:[%s198 + $0x30] sm:%s190] %v223
                  %v225 = vld [vmem:[%s197 + $0x9c] sm:%s190]
                  %226 = vst [vmem:[%s198 + $0x34] sm:%s190] %v225
                  %v227 = vld [vmem:[%s197 + $0xa8] sm:%s190]
                  %228 = vst [vmem:[%s198 + $0x38] sm:%s190] %v227
                  %v229 = vld [vmem:[%s197 + $0xb4] sm:%s190]
                  %230 = vst [vmem:[%s198 + $0x3c] sm:%s190] %v229
                $region55: #{mixhop_forward.4} parent=42 // loop_footer
                  %s196 = sadd.s32 1, %s192
                $region56: #{mixhop_forward.4} parent=42 // loop_footer_branch
                  %191 = sbr.rel target = $region52
                $region57: #{mixhop_forward.4} parent=42 // loop_exit
                  _
              $region43: #{mixhop_forward.4} parent=27 // pred_fallthru
                _
            $region28: #{mixhop_forward.4} parent=23 // pred_fallthru
              _
            // Predicated region
            $region29: #{mixhop_forward.4} parent=23 // pred_check
              _
            $region30: #{mixhop_forward.4} parent=23 // pred_check_branch
              %136 = sbr.rel (0) target = $region32
            $region31: #{mixhop_forward.4} parent=23 // pred_region
              %s138 = ssub.s32 16, 1
              loop: start=0, step=1, limit=1
              $region33: #{mixhop_forward.4} parent=31 // loop_pre_header
                _
              $region34: #{mixhop_forward.4} parent=31 // loop_header
                %s140 = sphi 0, %s144
                %p141 = scmp.ge.s32.totalorder %s140, 1
                %s145 = sphi %s130, %s130
                %s146 = sphi %s125, %s125
              $region35: #{mixhop_forward.4} parent=31 // loop_header_branch
                %143 = sbr.rel (%p141) target = $region39
              $region36: #{mixhop_forward.4} parent=31 // loop_body
                %v147 = vld [vmem:[%s145] sm:%s138]
                %148 = vst [vmem:[%s146] sm:%s138] %v147
                %v149 = vld [vmem:[%s145 + $0xc] sm:%s138]
                %150 = vst [vmem:[%s146 + $0x4] sm:%s138] %v149
                %v151 = vld [vmem:[%s145 + $0x18] sm:%s138]
                %152 = vst [vmem:[%s146 + $0x8] sm:%s138] %v151
                %v153 = vld [vmem:[%s145 + $0x24] sm:%s138]
                %154 = vst [vmem:[%s146 + $0xc] sm:%s138] %v153
                %v155 = vld [vmem:[%s145 + $0x30] sm:%s138]
                %156 = vst [vmem:[%s146 + $0x10] sm:%s138] %v155
                %v157 = vld [vmem:[%s145 + $0x3c] sm:%s138]
                %158 = vst [vmem:[%s146 + $0x14] sm:%s138] %v157
                %v159 = vld [vmem:[%s145 + $0x48] sm:%s138]
                %160 = vst [vmem:[%s146 + $0x18] sm:%s138] %v159
                %v161 = vld [vmem:[%s145 + $0x54] sm:%s138]
                %162 = vst [vmem:[%s146 + $0x1c] sm:%s138] %v161
                %v163 = vld [vmem:[%s145 + $0x60] sm:%s138]
                %164 = vst [vmem:[%s146 + $0x20] sm:%s138] %v163
                %v165 = vld [vmem:[%s145 + $0x6c] sm:%s138]
                %166 = vst [vmem:[%s146 + $0x24] sm:%s138] %v165
                %v167 = vld [vmem:[%s145 + $0x78] sm:%s138]
                %168 = vst [vmem:[%s146 + $0x28] sm:%s138] %v167
                %v169 = vld [vmem:[%s145 + $0x84] sm:%s138]
                %170 = vst [vmem:[%s146 + $0x2c] sm:%s138] %v169
                %v171 = vld [vmem:[%s145 + $0x90] sm:%s138]
                %172 = vst [vmem:[%s146 + $0x30] sm:%s138] %v171
                %v173 = vld [vmem:[%s145 + $0x9c] sm:%s138]
                %174 = vst [vmem:[%s146 + $0x34] sm:%s138] %v173
                %v175 = vld [vmem:[%s145 + $0xa8] sm:%s138]
                %176 = vst [vmem:[%s146 + $0x38] sm:%s138] %v175
                %v177 = vld [vmem:[%s145 + $0xb4] sm:%s138]
                %178 = vst [vmem:[%s146 + $0x3c] sm:%s138] %v177
              $region37: #{mixhop_forward.4} parent=31 // loop_footer
                %s144 = sadd.s32 1, %s140
              $region38: #{mixhop_forward.4} parent=31 // loop_footer_branch
                %139 = sbr.rel target = $region34
              $region39: #{mixhop_forward.4} parent=31 // loop_exit
                _
            $region32: #{mixhop_forward.4} parent=23 // pred_fallthru
              _
          $region24: #{mixhop_forward.4} parent=19 // pred_fallthru
            _
          %231 = vnop
        $region20: #{mixhop_forward.4} parent=15 // pred_fallthru
          _
        // Predicated region
        $region58: #{mixhop_forward.4} parent=15 // pred_check
          %p232 = pneg %p68
        $region59: #{mixhop_forward.4} parent=15 // pred_check_branch
          %234 = sbr.rel (%p232) target = $region61
        $region60: #{mixhop_forward.4} parent=15 // pred_region
          %s235 = smul.u32 16, %s16
          %p236 = scmp.lt.s32.totalorder %s235, 47
          %s237 = scalar_select %p236, %s235, 47
          %s238 = smul.addr %s237, 4
          %s239 = scalar_lea.vmem %s1, %s238
          %s240 = smul.u32 16, %s16
        $region61: #{mixhop_forward.4} parent=15 // pred_fallthru
          _
      $region16: #{mixhop_forward.4} parent=5 // pred_fallthru
        _
      %p241 = scmp.le.s32.totalorder 1, %s8
      %p242 = scmp.lt.s32.totalorder %s8, 10
      %p243 = pnand %p241, %p242
      %p244 = pneg %p243
      // Predicated region
      $region62: #{mixhop_forward.4} parent=5 // pred_check
        _
      $region63: #{mixhop_forward.4} parent=5 // pred_check_branch
        %246 = sbr.rel (%p243) target = $region65
      $region64: #{mixhop_forward.4} parent=5 // pred_region
        %s247 = ssub.s32 %s8, 1
        %s248 = sand.u32 %s35, 1
        %s249 = sand.u32 %s35, 1
        %s250 = smul.addr %s249, 64
        %s251 = scalar_lea.vmem [#allocation3], %s250
        // Predicated region
        $region66: #{mixhop_forward.4} parent=64 // pred_check
          %p252 = pneg %p48
        $region67: #{mixhop_forward.4} parent=64 // pred_check_branch
          %254 = sbr.rel (%p252) target = $region69
        $region68: #{mixhop_forward.4} parent=64 // pred_region
          _
        $region69: #{mixhop_forward.4} parent=64 // pred_fallthru
          _
        %s255 = sand.u32 %s35, 1
        %s256 = sand.u32 %s35, 1
        %s257 = smul.addr %s256, 64
        %s258 = scalar_lea.vmem [#allocation3], %s257
        %p259 = pneg %p48
        %p260 = pneg %p45
        %s261 = smul.u32 16, %s18
        %p262 = scmp.lt.s32.totalorder %s261, 47
        %s263 = scalar_select %p262, %s261, 47
        %s264 = smul.addr %s263, 4
        %s265 = scalar_lea.vmem %s1, %s264
        %p266 = pneg %p74
        %p267 = pneg %p71
        %p268 = pneg %p100
        %p269 = pneg %p97
        %s270 = smul.u32 16, %s17
        %p271 = scmp.lt.s32.totalorder %s270, 47
        %s272 = scalar_select %p271, %s270, 47
        %s273 = smul.addr %s272, 4
        %s274 = scalar_lea.vmem %s2, %s273
        %s275 = smul.u32 16, %s17
        %s276 = smul.u32 16, %s18
        %p277 = scmp.lt.s32.totalorder %s276, 47
        %s278 = scalar_select %p277, %s276, 47
        %s279 = smul.addr %s278, 4
        %s280 = scalar_lea.vmem %s1, %s279
        %s281 = smul.u32 16, %s18
        %s282 = smul.u32 16, %s17
        %p283 = scmp.lt.s32.totalorder %s282, 47
        %s284 = scalar_select %p283, %s282, 47
        %s285 = smul.addr %s284, 4
        %s286 = scalar_lea.vmem %s2, %s285
        %s287 = smul.u32 16, %s17
        %p288 = scmp.eq.s32.totalorder %s18, 0
        // Predicated region
        $region70: #{mixhop_forward.4} parent=64 // pred_check
          %p289 = pneg %p288
        $region71: #{mixhop_forward.4} parent=64 // pred_check_branch
          %291 = sbr.rel (%p289) target = $region73
        $region72: #{mixhop_forward.4} parent=64 // pred_region
          %292 = vst [vmem:[#allocation2] sm:$0xff] 0.0
          %293 = vst [vmem:[#allocation2 + $0x8] sm:$0xff] 0.0
          %294 = vst [vmem:[#allocation2 + $0x10] sm:$0xff] 0.0
          %295 = vst [vmem:[#allocation2 + $0x18] sm:$0xff] 0.0
          %296 = vst [vmem:[#allocation2 + $0x20] sm:$0xff] 0.0
          %297 = vst [vmem:[#allocation2 + $0x28] sm:$0xff] 0.0
          %298 = vst [vmem:[#allocation2 + $0x30] sm:$0xff] 0.0
          %299 = vst [vmem:[#allocation2 + $0x38] sm:$0xff] 0.0
          %300 = vst [vmem:[#allocation2 + $0x40] sm:$0xff] 0.0
          %301 = vst [vmem:[#allocation2 + $0x48] sm:$0xff] 0.0
          %302 = vst [vmem:[#allocation2 + $0x50] sm:$0xff] 0.0
          %303 = vst [vmem:[#allocation2 + $0x58] sm:$0xff] 0.0
          %304 = vst [vmem:[#allocation2 + $0x60] sm:$0xff] 0.0
          %305 = vst [vmem:[#allocation2 + $0x68] sm:$0xff] 0.0
          %306 = vst [vmem:[#allocation2 + $0x70] sm:$0xff] 0.0
          %307 = vst [vmem:[#allocation2 + $0x78] sm:$0xff] 0.0
        $region73: #{mixhop_forward.4} parent=64 // pred_fallthru
          _
        %v308 = vld [vmem:[#allocation2] sm:$0xff]
        %v309 = vld [vmem:[#allocation2 + $0x8] sm:$0xff]
        %v310 = vld [vmem:[#allocation2 + $0x10] sm:$0xff]
        %v311 = vld [vmem:[#allocation2 + $0x18] sm:$0xff]
        %v312 = vld [vmem:[#allocation2 + $0x20] sm:$0xff]
        %v313 = vld [vmem:[#allocation2 + $0x28] sm:$0xff]
        %v314 = vld [vmem:[#allocation2 + $0x30] sm:$0xff]
        %v315 = vld [vmem:[#allocation2 + $0x38] sm:$0xff]
        %v316 = vld [vmem:[#allocation2 + $0x40] sm:$0xff]
        %v317 = vld [vmem:[#allocation2 + $0x48] sm:$0xff]
        %v318 = vld [vmem:[#allocation2 + $0x50] sm:$0xff]
        %v319 = vld [vmem:[#allocation2 + $0x58] sm:$0xff]
        %v320 = vld [vmem:[#allocation2 + $0x60] sm:$0xff]
        %v321 = vld [vmem:[#allocation2 + $0x68] sm:$0xff]
        %v322 = vld [vmem:[#allocation2 + $0x70] sm:$0xff]
        %v323 = vld [vmem:[#allocation2 + $0x78] sm:$0xff]
        %v324 = vld [vmem:[%s251] sm:$0xf]
        %v325 = vld [vmem:[%s251 + $0x4] sm:$0xf]
        %v326 = vld [vmem:[%s251 + $0x8] sm:$0xf]
        %v327 = vld [vmem:[%s251 + $0xc] sm:$0xf]
        %v328 = vld [vmem:[%s251 + $0x10] sm:$0xf]
        %v329 = vld [vmem:[%s251 + $0x14] sm:$0xf]
        %v330 = vld [vmem:[%s251 + $0x18] sm:$0xf]
        %v331 = vld [vmem:[%s251 + $0x1c] sm:$0xf]
        %v332 = vld [vmem:[%s251 + $0x20] sm:$0xf]
        %v333 = vld [vmem:[%s251 + $0x24] sm:$0xf]
        %v334 = vld [vmem:[%s251 + $0x28] sm:$0xf]
        %v335 = vld [vmem:[%s251 + $0x2c] sm:$0xf]
        %v336 = vld [vmem:[%s251 + $0x30] sm:$0xf]
        %v337 = vld [vmem:[%s251 + $0x34] sm:$0xf]
        %v338 = vld [vmem:[%s251 + $0x38] sm:$0xf]
        %v339 = vld [vmem:[%s251 + $0x3c] sm:$0xf]
        %v340 = vld [vmem:[%s280] sm:$0xf]
        %v341 = vld [vmem:[%s280 + $0x4] sm:$0xf]
        %v342 = vld [vmem:[%s280 + $0x8] sm:$0xf]
        %v343 = vld [vmem:[%s280 + $0xc] sm:$0xf]
        %v344 = vld [vmem:[%s280 + $0x10] sm:$0xf]
        %v345 = vld [vmem:[%s280 + $0x14] sm:$0xf]
        %v346 = vld [vmem:[%s280 + $0x18] sm:$0xf]
        %v347 = vld [vmem:[%s280 + $0x1c] sm:$0xf]
        %v348 = vld [vmem:[%s280 + $0x20] sm:$0xf]
        %v349 = vld [vmem:[%s280 + $0x24] sm:$0xf]
        %v350 = vld [vmem:[%s280 + $0x28] sm:$0xf]
        %v351 = vld [vmem:[%s280 + $0x2c] sm:$0xf]
        %v352 = vld [vmem:[%s280 + $0x30] sm:$0xf]
        %v353 = vld [vmem:[%s280 + $0x34] sm:$0xf]
        %v354 = vld [vmem:[%s280 + $0x38] sm:$0xf]
        %v355 = vld [vmem:[%s280 + $0x3c] sm:$0xf]
        %v372 = vunpack.c.l.b16 %v324
        %v373 = vunpack.c.l.b16 %v325
        %v374 = vunpack.c.l.b16 %v326
        %v375 = vunpack.c.l.b16 %v327
        %v376 = vunpack.c.l.b16 %v328
        %v377 = vunpack.c.l.b16 %v329
        %v378 = vunpack.c.l.b16 %v330
        %v379 = vunpack.c.l.b16 %v331
        %v380 = vunpack.c.l.b16 %v332
        %v381 = vunpack.c.l.b16 %v333
        %v382 = vunpack.c.l.b16 %v334
        %v383 = vunpack.c.l.b16 %v335
        %v384 = vunpack.c.l.b16 %v336
        %v385 = vunpack.c.l.b16 %v337
        %v386 = vunpack.c.l.b16 %v338
        %v387 = vunpack.c.l.b16 %v339
        %v388 = vpack.c.b16 %v373, %v372
        %v389 = vpack.c.b16 %v375, %v374
        %v390 = vpack.c.b16 %v377, %v376
        %v391 = vpack.c.b16 %v379, %v378
        %v392 = vpack.c.b16 %v381, %v380
        %v393 = vpack.c.b16 %v383, %v382
        %v394 = vpack.c.b16 %v385, %v384
        %v395 = vpack.c.b16 %v387, %v386
        %v420 = vunpack.c.l.b16 %v340
        %v421 = vunpack.c.l.b16 %v341
        %v422 = vunpack.c.l.b16 %v342
        %v423 = vunpack.c.l.b16 %v343
        %v424 = vunpack.c.l.b16 %v344
        %v425 = vunpack.c.l.b16 %v345
        %v426 = vunpack.c.l.b16 %v346
        %v427 = vunpack.c.l.b16 %v347
        %v428 = vunpack.c.l.b16 %v348
        %v429 = vunpack.c.l.b16 %v349
        %v430 = vunpack.c.l.b16 %v350
        %v431 = vunpack.c.l.b16 %v351
        %v432 = vunpack.c.l.b16 %v352
        %v433 = vunpack.c.l.b16 %v353
        %v434 = vunpack.c.l.b16 %v354
        %v435 = vunpack.c.l.b16 %v355
        %v436 = vpack.c.b16 %v421, %v420
        %v437 = vpack.c.b16 %v423, %v422
        %v438 = vpack.c.b16 %v425, %v424
        %v439 = vpack.c.b16 %v427, %v426
        %v440 = vpack.c.b16 %v429, %v428
        %v441 = vpack.c.b16 %v431, %v430
        %v442 = vpack.c.b16 %v433, %v432
        %v443 = vpack.c.b16 %v435, %v434
        %452 = vmatpush.bf16.msra.mxu0 %v443
        %453 = vmatpush.bf16.msra.mxu0 %v442
        %454 = vmatpush.bf16.msra.mxu0 %v441
        %455 = vmatpush.bf16.msra.mxu0 %v440
        %456 = vmatpush.bf16.msra.mxu0 %v439
        %457 = vmatpush.bf16.msra.mxu0 %v438
        %458 = vmatpush.bf16.msra.mxu0 %v437
        %459 = vmatpush.bf16.msra.mxu0 %v436
        %460 = vmatmul.bf16.gmra.mxu0 %v388
        %v461 = vpop.f32.mrf.mxu0
        %v462 = vadd.f32 0.0, %v461
        %v463 = vpop.f32.mrf.mxu0
        %v464 = vadd.f32 0.0, %v463
        %465 = vmatmul.bf16.gmra.mxu0 %v389
        %v466 = vpop.f32.mrf.mxu0
        %v467 = vadd.f32 0.0, %v466
        %v468 = vpop.f32.mrf.mxu0
        %v469 = vadd.f32 0.0, %v468
        %470 = vmatmul.bf16.gmra.mxu0 %v390
        %v471 = vpop.f32.mrf.mxu0
        %v472 = vadd.f32 0.0, %v471
        %v473 = vpop.f32.mrf.mxu0
        %v474 = vadd.f32 0.0, %v473
        %475 = vmatmul.bf16.gmra.mxu0 %v391
        %v476 = vpop.f32.mrf.mxu0
        %v477 = vadd.f32 0.0, %v476
        %v478 = vpop.f32.mrf.mxu0
        %v479 = vadd.f32 0.0, %v478
        %480 = vmatmul.bf16.gmra.mxu0 %v392
        %v481 = vpop.f32.mrf.mxu0
        %v482 = vadd.f32 0.0, %v481
        %v483 = vpop.f32.mrf.mxu0
        %v484 = vadd.f32 0.0, %v483
        %485 = vmatmul.bf16.gmra.mxu0 %v393
        %v486 = vpop.f32.mrf.mxu0
        %v487 = vadd.f32 0.0, %v486
        %v488 = vpop.f32.mrf.mxu0
        %v489 = vadd.f32 0.0, %v488
        %490 = vmatmul.bf16.gmra.mxu0 %v394
        %v491 = vpop.f32.mrf.mxu0
        %v492 = vadd.f32 0.0, %v491
        %v493 = vpop.f32.mrf.mxu0
        %v494 = vadd.f32 0.0, %v493
        %495 = vmatmul.bf16.gmra.mxu0 %v395
        %v496 = vpop.f32.mrf.mxu0
        %v497 = vadd.f32 0.0, %v496
        %v498 = vpop.f32.mrf.mxu0
        %v499 = vadd.f32 0.0, %v498
        %500 = vdwg.mxu0
        %v501 = vadd.f32 %v308, %v462
        %v502 = vadd.f32 %v309, %v464
        %v503 = vadd.f32 %v310, %v467
        %v504 = vadd.f32 %v311, %v469
        %v505 = vadd.f32 %v312, %v472
        %v506 = vadd.f32 %v313, %v474
        %v507 = vadd.f32 %v314, %v477
        %v508 = vadd.f32 %v315, %v479
        %v509 = vadd.f32 %v316, %v482
        %v510 = vadd.f32 %v317, %v484
        %v511 = vadd.f32 %v318, %v487
        %v512 = vadd.f32 %v319, %v489
        %v513 = vadd.f32 %v320, %v492
        %v514 = vadd.f32 %v321, %v494
        %v515 = vadd.f32 %v322, %v497
        %v516 = vadd.f32 %v323, %v499
        %517 = vst [vmem:[#allocation2] sm:$0xff] %v501
        %518 = vst [vmem:[#allocation2 + $0x8] sm:$0xff] %v502
        %519 = vst [vmem:[#allocation2 + $0x10] sm:$0xff] %v503
        %520 = vst [vmem:[#allocation2 + $0x18] sm:$0xff] %v504
        %521 = vst [vmem:[#allocation2 + $0x20] sm:$0xff] %v505
        %522 = vst [vmem:[#allocation2 + $0x28] sm:$0xff] %v506
        %523 = vst [vmem:[#allocation2 + $0x30] sm:$0xff] %v507
        %524 = vst [vmem:[#allocation2 + $0x38] sm:$0xff] %v508
        %525 = vst [vmem:[#allocation2 + $0x40] sm:$0xff] %v509
        %526 = vst [vmem:[#allocation2 + $0x48] sm:$0xff] %v510
        %527 = vst [vmem:[#allocation2 + $0x50] sm:$0xff] %v511
        %528 = vst [vmem:[#allocation2 + $0x58] sm:$0xff] %v512
        %529 = vst [vmem:[#allocation2 + $0x60] sm:$0xff] %v513
        %530 = vst [vmem:[#allocation2 + $0x68] sm:$0xff] %v514
        %531 = vst [vmem:[#allocation2 + $0x70] sm:$0xff] %v515
        %532 = vst [vmem:[#allocation2 + $0x78] sm:$0xff] %v516
        %p533 = scmp.eq.s32.totalorder %s18, 2
        // Predicated region
        $region74: #{mixhop_forward.4} parent=64 // pred_check
          %p534 = pneg %p533
        $region75: #{mixhop_forward.4} parent=64 // pred_check_branch
          %536 = sbr.rel (%p534) target = $region77
        $region76: #{mixhop_forward.4} parent=64 // pred_region
          %v537 = vld [vmem:[#allocation2] sm:$0xff]
          %v538 = vld [vmem:[#allocation2 + $0x8] sm:$0xff]
          %v539 = vld [vmem:[#allocation2 + $0x10] sm:$0xff]
          %v540 = vld [vmem:[#allocation2 + $0x18] sm:$0xff]
          %v541 = vld [vmem:[#allocation2 + $0x20] sm:$0xff]
          %v542 = vld [vmem:[#allocation2 + $0x28] sm:$0xff]
          %v543 = vld [vmem:[#allocation2 + $0x30] sm:$0xff]
          %v544 = vld [vmem:[#allocation2 + $0x38] sm:$0xff]
          %v545 = vld [vmem:[#allocation2 + $0x40] sm:$0xff]
          %v546 = vld [vmem:[#allocation2 + $0x48] sm:$0xff]
          %v547 = vld [vmem:[#allocation2 + $0x50] sm:$0xff]
          %v548 = vld [vmem:[#allocation2 + $0x58] sm:$0xff]
          %v549 = vld [vmem:[#allocation2 + $0x60] sm:$0xff]
          %v550 = vld [vmem:[#allocation2 + $0x68] sm:$0xff]
          %v551 = vld [vmem:[#allocation2 + $0x70] sm:$0xff]
          %v552 = vld [vmem:[#allocation2 + $0x78] sm:$0xff]
          %v553 = vpack.c.bf16 %v537, %v537
          %v554 = vpack.c.bf16 %v538, %v538
          %v555 = vpack.c.bf16 %v539, %v539
          %v556 = vpack.c.bf16 %v540, %v540
          %v557 = vpack.c.bf16 %v541, %v541
          %v558 = vpack.c.bf16 %v542, %v542
          %v559 = vpack.c.bf16 %v543, %v543
          %v560 = vpack.c.bf16 %v544, %v544
          %v561 = vpack.c.bf16 %v545, %v545
          %v562 = vpack.c.bf16 %v546, %v546
          %v563 = vpack.c.bf16 %v547, %v547
          %v564 = vpack.c.bf16 %v548, %v548
          %v565 = vpack.c.bf16 %v549, %v549
          %v566 = vpack.c.bf16 %v550, %v550
          %v567 = vpack.c.bf16 %v551, %v551
          %v568 = vpack.c.bf16 %v552, %v552
          %569 = vst [vmem:[%s286] sm:$0xf] %v553
          %570 = vst [vmem:[%s286 + $0x4] sm:$0xf] %v554
          %571 = vst [vmem:[%s286 + $0x8] sm:$0xf] %v555
          %572 = vst [vmem:[%s286 + $0xc] sm:$0xf] %v556
          %573 = vst [vmem:[%s286 + $0x10] sm:$0xf] %v557
          %574 = vst [vmem:[%s286 + $0x14] sm:$0xf] %v558
          %575 = vst [vmem:[%s286 + $0x18] sm:$0xf] %v559
          %576 = vst [vmem:[%s286 + $0x1c] sm:$0xf] %v560
          %577 = vst [vmem:[%s286 + $0x20] sm:$0xf] %v561
          %578 = vst [vmem:[%s286 + $0x24] sm:$0xf] %v562
          %579 = vst [vmem:[%s286 + $0x28] sm:$0xf] %v563
          %580 = vst [vmem:[%s286 + $0x2c] sm:$0xf] %v564
          %581 = vst [vmem:[%s286 + $0x30] sm:$0xf] %v565
          %582 = vst [vmem:[%s286 + $0x34] sm:$0xf] %v566
          %583 = vst [vmem:[%s286 + $0x38] sm:$0xf] %v567
          %584 = vst [vmem:[%s286 + $0x3c] sm:$0xf] %v568
        $region77: #{mixhop_forward.4} parent=64 // pred_fallthru
          _
        %s585 = smul.u32 16, %s17
        %p586 = scmp.lt.s32.totalorder %s585, 47
        %s587 = scalar_select %p586, %s585, 47
        %s588 = smul.addr %s587, 4
        %s589 = scalar_lea.vmem %s2, %s588
        // Predicated region
        $region78: #{mixhop_forward.4} parent=64 // pred_check
          %p590 = pneg %p97
        $region79: #{mixhop_forward.4} parent=64 // pred_check_branch
          %592 = sbr.rel (%p590) target = $region81
        $region80: #{mixhop_forward.4} parent=64 // pred_region
          %s593 = smul.u32 16, %s17
        $region81: #{mixhop_forward.4} parent=64 // pred_fallthru
          _
      $region65: #{mixhop_forward.4} parent=5 // pred_fallthru
        _
      %p594 = scmp.le.s32.totalorder 2, %s8
      // Predicated region
      $region82: #{mixhop_forward.4} parent=5 // pred_check
        %p595 = pneg %p594
      $region83: #{mixhop_forward.4} parent=5 // pred_check_branch
        %597 = sbr.rel (%p595) target = $region85
      $region84: #{mixhop_forward.4} parent=5 // pred_region
        %s598 = ssub.s32 %s8, 2
        // Predicated region
        $region86: #{mixhop_forward.4} parent=84 // pred_check
          %p599 = pneg %p103
        $region87: #{mixhop_forward.4} parent=84 // pred_check_branch
          %601 = sbr.rel (%p599) target = $region89
        $region88: #{mixhop_forward.4} parent=84 // pred_region
          %s602 = smul.u32 16, %s19
          %p603 = scmp.lt.s32.totalorder %s602, 47
          %s604 = scalar_select %p603, %s602, 47
          %s605 = smul.addr %s604, 4
          %s606 = scalar_lea.vmem %s2, %s605
        $region89: #{mixhop_forward.4} parent=84 // pred_fallthru
          _
      $region85: #{mixhop_forward.4} parent=5 // pred_fallthru
        _
    $region6: #{mixhop_forward.4} parent=1 // loop_footer
      %s12 = sadd.s32 1, %s8
    $region7: #{mixhop_forward.4} parent=1 // loop_footer_branch
      %7 = sbr.rel target = $region3
    $region8: #{mixhop_forward.4} parent=1 // loop_exit
      _

// kernel: mixhop_forward.5
$region0: #{mixhop_forward.5}
  #allocation0 [shape = 'u32[]', space=smem, size = 0x4, offset = 0x4, fixed_abs, tag = 'smem constant byte address 0x4 - core index']
  #allocation1 [shape = 'u32[72,128]{1,0:T(1,128)}', space=vmem, size = 0x9000, scoped, tag = 'internal scratch']
  #allocation2 [shape = 'f32[128,128]{1,0:T(8,128)}', space=vmem, size = 0x10000, scoped, tag = 'scratch operand']
  #allocation3 [shape = 'bf16[128,384]{1,0:T(8,128)(2,1)}', space=vmem, size = 0x18000, scoped, tag = 'scratch operand']
  %s0 = inlined_call_operand.vmem [shape: bf16[384,384], index: 0, kind: input, shape index: {}]
  %s1 = inlined_call_operand.vmem [shape: bf16[384,128], index: 1, kind: input, shape index: {}, may-alias: {1,3}]
  %s2 = inlined_call_operand.vmem [shape: bf16[384,128], index: 2, kind: input, shape index: {}]
  %s3 = inlined_call_operand.vmem [shape: bf16[384,128], index: 3, kind: input, shape index: {}, may-alias: {1,3}]
  %s4 = inlined_call_operand.vmem [shape: bf16[384,128], index: 4, kind: input, shape index: {}]
  %s5 = inlined_call_operand.vmem [shape: f32[1,128], index: 5, kind: input, shape index: {}]
  %s6 = inlined_call_operand.vmem [shape: f32[384,128], index: 6, kind: output, shape index: {}]
  %s7 = sld [smem:[#allocation0]]
  $region106: #{mixhop_forward.5} parent=0
    _
  %s9 = ssub.s32 1, %s7
  %s10 = scalar_select 0, %s9, %s7
  $region1: #{mixhop_forward.5} parent=0
    #allocation4 [shape = 'u8[65536]{0}', space=vmem, size = 0x10000, scoped, tag = 'input window, operand 0']
    loop: start=0, step=1, limit=11
    $region2: #{mixhop_forward.5} parent=1 // loop_pre_header
      _
    $region3: #{mixhop_forward.5} parent=1 // loop_header
      %s12 = sphi 0, %s16
      %p13 = scmp.ge.s32.totalorder %s12, 11
      %s19 = sphi 0, %s31
      %s20 = sphi 0, %s27
      %s21 = sphi 0, %s19
      %s22 = sphi 0, %s20
      %s23 = sphi 0, %s21
      %s24 = sphi 0, %s22
      %s36 = sphi 0, %s38
      %s39 = sphi 0, %s36
      %s40 = sphi 0, %s39
      %s56 = sphi 0, %s40
      %s62 = sphi 0, %s64
      %s65 = sphi 0, %s62
      %s66 = sphi 0, %s65
      %s82 = sphi 0, %s66
      %s88 = sphi 0, %s90
      %s91 = sphi 0, %s88
      %s92 = sphi 0, %s91
      %s108 = sphi 0, %s92
      %s114 = sphi 0, %s116
      %s117 = sphi 0, %s114
      %s118 = sphi 0, %s117
      %s134 = sphi 0, %s118
      %s138 = sphi 0, %s138
      %s140 = sphi 0, %s138
      %s141 = sphi 0, %s140
      %s155 = sphi 0, %s141
      %s159 = sphi 0, %s159
      %s161 = sphi 0, %s159
      %s162 = sphi 0, %s161
      %s176 = sphi 0, %s162
      %s182 = sphi 0, %s184
      %s185 = sphi 0, %s182
      %s186 = sphi 0, %s185
      %s202 = sphi 0, %s186
    $region4: #{mixhop_forward.5} parent=1 // loop_header_branch
      %15 = sbr.rel (%p13) target = $region8
    $region5: #{mixhop_forward.5} parent=1 // loop_body
      %s17 = ssub.s32 %s12, 1
      %s18 = ssub.s32 %s12, 2
      %s25 = sadd.s32 1, %s20
      %p26 = scmp.ge.s32.totalorder %s25, 3
      %s27 = scalar_select %p26, 0, %s25
      %s28 = sadd.s32 1, %s19
      %s29 = scalar_select %p26, %s28, %s19
      %p30 = scmp.ge.s32.totalorder %s29, 3
      %s31 = scalar_select %p30, 0, %s29
      %s32 = ssub.s32 %s19, %s31
      %s33 = ssub.s32 %s20, %s27
      %s34 = sor.u32 %s32, %s33
      %p35 = scmp.eq.s32.totalorder %s34, 0
      %s37 = sadd.s32 %s36, 1
      %s38 = scalar_select %p35, %s36, %s37
      %p41 = pneg %p35
      %p42 = scmp.eq.s32.totalorder %s12, 8
      %p43 = por %p41, %p42
      %p44 = scmp.ne.s32.totalorder %s36, %s39
      %p45 = scmp.eq.s32.totalorder %s12, 0
      %p46 = por %p44, %p45
      %p47 = scmp.ne.s32.totalorder %s36, %s39
      %p48 = scmp.eq.s32.totalorder %s17, 8
      %p49 = por %p47, %p48
      %p50 = scmp.ne.s32.totalorder %s39, %s40
      %p51 = scmp.eq.s32.totalorder %s17, 0
      %p52 = por %p50, %p51
      %p53 = scmp.ne.s32.totalorder %s39, %s40
      %p54 = scmp.eq.s32.totalorder %s18, 8
      %p55 = por %p53, %p54
      %p57 = scmp.ne.s32.totalorder %s40, %s56
      %p58 = scmp.eq.s32.totalorder %s18, 0
      %p59 = por %p57, %p58
      %s60 = ssub.s32 %s20, %s27
      %p61 = scmp.eq.s32.totalorder %s60, 0
      %s63 = sadd.s32 %s62, 1
      %s64 = scalar_select %p61, %s62, %s63
      %p67 = pneg %p61
      %p68 = scmp.eq.s32.totalorder %s12, 8
      %p69 = por %p67, %p68
      %p70 = scmp.ne.s32.totalorder %s62, %s65
      %p71 = scmp.eq.s32.totalorder %s12, 0
      %p72 = por %p70, %p71
      %p73 = scmp.ne.s32.totalorder %s62, %s65
      %p74 = scmp.eq.s32.totalorder %s17, 8
      %p75 = por %p73, %p74
      %p76 = scmp.ne.s32.totalorder %s65, %s66
      %p77 = scmp.eq.s32.totalorder %s17, 0
      %p78 = por %p76, %p77
      %p79 = scmp.ne.s32.totalorder %s65, %s66
      %p80 = scmp.eq.s32.totalorder %s18, 8
      %p81 = por %p79, %p80
      %p83 = scmp.ne.s32.totalorder %s66, %s82
      %p84 = scmp.eq.s32.totalorder %s18, 0
      %p85 = por %p83, %p84
      %s86 = ssub.s32 %s19, %s31
      %p87 = scmp.eq.s32.totalorder %s86, 0
      %s89 = sadd.s32 %s88, 1
      %s90 = scalar_select %p87, %s88, %s89
      %p93 = pneg %p87
      %p94 = scmp.eq.s32.totalorder %s12, 8
      %p95 = por %p93, %p94
      %p96 = scmp.ne.s32.totalorder %s88, %s91
      %p97 = scmp.eq.s32.totalorder %s12, 0
      %p98 = por %p96, %p97
      %p99 = scmp.ne.s32.totalorder %s88, %s91
      %p100 = scmp.eq.s32.totalorder %s17, 8
      %p101 = por %p99, %p100
      %p102 = scmp.ne.s32.totalorder %s91, %s92
      %p103 = scmp.eq.s32.totalorder %s17, 0
      %p104 = por %p102, %p103
      %p105 = scmp.ne.s32.totalorder %s91, %s92
      %p106 = scmp.eq.s32.totalorder %s18, 8
      %p107 = por %p105, %p106
      %p109 = scmp.ne.s32.totalorder %s92, %s108
      %p110 = scmp.eq.s32.totalorder %s18, 0
      %p111 = por %p109, %p110
      %s112 = ssub.s32 %s19, %s31
      %p113 = scmp.eq.s32.totalorder %s112, 0
      %s115 = sadd.s32 %s114, 1
      %s116 = scalar_select %p113, %s114, %s115
      %p119 = pneg %p113
      %p120 = scmp.eq.s32.totalorder %s12, 8
      %p121 = por %p119, %p120
      %p122 = scmp.ne.s32.totalorder %s114, %s117
      %p123 = scmp.eq.s32.totalorder %s12, 0
      %p124 = por %p122, %p123
      %p125 = scmp.ne.s32.totalorder %s114, %s117
      %p126 = scmp.eq.s32.totalorder %s17, 8
      %p127 = por %p125, %p126
      %p128 = scmp.ne.s32.totalorder %s117, %s118
      %p129 = scmp.eq.s32.totalorder %s17, 0
      %p130 = por %p128, %p129
      %p131 = scmp.ne.s32.totalorder %s117, %s118
      %p132 = scmp.eq.s32.totalorder %s18, 8
      %p133 = por %p131, %p132
      %p135 = scmp.ne.s32.totalorder %s118, %s134
      %p136 = scmp.eq.s32.totalorder %s18, 0
      %p137 = por %p135, %p136
      %s139 = sadd.s32 %s138, 1
      %p142 = scmp.eq.s32.totalorder %s12, 8
      %p143 = scmp.ne.s32.totalorder %s138, %s140
      %p144 = scmp.eq.s32.totalorder %s12, 0
      %p145 = por %p143, %p144
      %p146 = scmp.ne.s32.totalorder %s138, %s140
      %p147 = scmp.eq.s32.totalorder %s17, 8
      %p148 = por %p146, %p147
      %p149 = scmp.ne.s32.totalorder %s140, %s141
      %p150 = scmp.eq.s32.totalorder %s17, 0
      %p151 = por %p149, %p150
      %p152 = scmp.ne.s32.totalorder %s140, %s141
      %p153 = scmp.eq.s32.totalorder %s18, 8
      %p154 = por %p152, %p153
      %p156 = scmp.ne.s32.totalorder %s141, %s155
      %p157 = scmp.eq.s32.totalorder %s18, 0
      %p158 = por %p156, %p157
      %s160 = sadd.s32 %s159, 1
      %p163 = scmp.eq.s32.totalorder %s12, 8
      %p164 = scmp.ne.s32.totalorder %s159, %s161
      %p165 = scmp.eq.s32.totalorder %s12, 0
      %p166 = por %p164, %p165
      %p167 = scmp.ne.s32.totalorder %s159, %s161
      %p168 = scmp.eq.s32.totalorder %s17, 8
      %p169 = por %p167, %p168
      %p170 = scmp.ne.s32.totalorder %s161, %s162
      %p171 = scmp.eq.s32.totalorder %s17, 0
      %p172 = por %p170, %p171
      %p173 = scmp.ne.s32.totalorder %s161, %s162
      %p174 = scmp.eq.s32.totalorder %s18, 8
      %p175 = por %p173, %p174
      %p177 = scmp.ne.s32.totalorder %s162, %s176
      %p178 = scmp.eq.s32.totalorder %s18, 0
      %p179 = por %p177, %p178
      %s180 = ssub.s32 %s19, %s31
      %p181 = scmp.eq.s32.totalorder %s180, 0
      %s183 = sadd.s32 %s182, 1
      %s184 = scalar_select %p181, %s182, %s183
      %p187 = pneg %p181
      %p188 = scmp.eq.s32.totalorder %s12, 8
      %p189 = por %p187, %p188
      %p190 = scmp.ne.s32.totalorder %s182, %s185
      %p191 = scmp.eq.s32.totalorder %s12, 0
      %p192 = por %p190, %p191
      %p193 = scmp.ne.s32.totalorder %s182, %s185
      %p194 = scmp.eq.s32.totalorder %s17, 8
      %p195 = por %p193, %p194
      %p196 = scmp.ne.s32.totalorder %s185, %s186
      %p197 = scmp.eq.s32.totalorder %s17, 0
      %p198 = por %p196, %p197
      %p199 = scmp.ne.s32.totalorder %s185, %s186
      %p200 = scmp.eq.s32.totalorder %s18, 8
      %p201 = por %p199, %p200
      %p203 = scmp.ne.s32.totalorder %s186, %s202
      %p204 = scmp.eq.s32.totalorder %s18, 0
      %p205 = por %p203, %p204
      %p206 = scmp.le.s32.totalorder 1, %s12
      %p207 = scmp.lt.s32.totalorder %s12, 10
      %p208 = pnand %p206, %p207
      %p209 = pneg %p208
      // Predicated region
      $region9: #{mixhop_forward.5} parent=5 // pred_check
        _
      $region10: #{mixhop_forward.5} parent=5 // pred_check_branch
        %211 = sbr.rel (%p208) target = $region12
      $region11: #{mixhop_forward.5} parent=5 // pred_region
        %s212 = ssub.s32 %s12, 1
        // Predicated region
        $region13: #{mixhop_forward.5} parent=11 // pred_check
          %p213 = pneg %p151
        $region14: #{mixhop_forward.5} parent=11 // pred_check_branch
          %215 = sbr.rel (%p213) target = $region16
        $region15: #{mixhop_forward.5} parent=11 // pred_region
          _
        $region16: #{mixhop_forward.5} parent=11 // pred_fallthru
          _
        // Predicated region
        $region17: #{mixhop_forward.5} parent=11 // pred_check
          %p216 = pneg %p172
        $region18: #{mixhop_forward.5} parent=11 // pred_check_branch
          %218 = sbr.rel (%p216) target = $region20
        $region19: #{mixhop_forward.5} parent=11 // pred_region
          _
        $region20: #{mixhop_forward.5} parent=11 // pred_fallthru
          _
      $region12: #{mixhop_forward.5} parent=5 // pred_fallthru
        _
      %p219 = scmp.lt.s32.totalorder %s12, 9
      // Predicated region
      $region21: #{mixhop_forward.5} parent=5 // pred_check
        %p220 = pneg %p219
      $region22: #{mixhop_forward.5} parent=5 // pred_check_branch
        %222 = sbr.rel (%p220) target = $region24
      $region23: #{mixhop_forward.5} parent=5 // pred_region
        // Predicated region
        $region25: #{mixhop_forward.5} parent=23 // pred_check
          %p223 = pneg %p46
        $region26: #{mixhop_forward.5} parent=23 // pred_check_branch
          %225 = sbr.rel (%p223) target = $region28
        $region27: #{mixhop_forward.5} parent=23 // pred_region
          %s226 = sand.u32 %s36, 1
          %s227 = sand.u32 %s36, 1
          %s228 = smul.addr %s227, 64
          %s229 = scalar_lea.vmem [#allocation4], %s228
          %s230 = smul.u32 16, %s19
          %s231 = smul.addr %s230, 3
          %s232 = sadd.s32 %s20, %s231
          %s233 = smul.addr %s232, 4
          %s234 = scalar_lea.vmem %s0, %s233
          // Predicated region
          $region29: #{mixhop_forward.5} parent=27 // pred_check
            _
          $region30: #{mixhop_forward.5} parent=27 // pred_check_branch
            %236 = sbr.rel (0) target = $region32
          $region31: #{mixhop_forward.5} parent=27 // pred_region
            // Predicated region
            $region33: #{mixhop_forward.5} parent=31 // pred_check
              _
            $region34: #{mixhop_forward.5} parent=31 // pred_check_branch
              %238 = sbr.rel target = $region36
            $region35: #{mixhop_forward.5} parent=31 // pred_region
              // Predicated region
              $region48: #{mixhop_forward.5} parent=35 // pred_check
                _
              $region49: #{mixhop_forward.5} parent=35 // pred_check_branch
                %284 = sbr.rel (0) target = $region51
              $region50: #{mixhop_forward.5} parent=35 // pred_region
                loop: start=0, step=1, limit=1
                $region52: #{mixhop_forward.5} parent=50 // loop_pre_header
                  _
                $region53: #{mixhop_forward.5} parent=50 // loop_header
                  %s286 = sphi 0, %s290
                  %p287 = scmp.ge.s32.totalorder %s286, 1
                  %s291 = sphi %s234, %s234
                  %s292 = sphi %s229, %s229
                $region54: #{mixhop_forward.5} parent=50 // loop_header_branch
                  %289 = sbr.rel (%p287) target = $region58
                $region55: #{mixhop_forward.5} parent=50 // loop_body
                  _
                $region56: #{mixhop_forward.5} parent=50 // loop_footer
                  %s290 = sadd.s32 1, %s286
                $region57: #{mixhop_forward.5} parent=50 // loop_footer_branch
                  %285 = sbr.rel target = $region53
                $region58: #{mixhop_forward.5} parent=50 // loop_exit
                  _
                %s294 = ssub.s32 16, 1
                loop: start=0, step=1, limit=1
                $region59: #{mixhop_forward.5} parent=50 // loop_pre_header
                  _
                $region60: #{mixhop_forward.5} parent=50 // loop_header
                  %s296 = sphi 0, %s300
                  %p297 = scmp.ge.s32.totalorder %s296, 1
                  %s301 = sphi %s234, %s234
                  %s302 = sphi %s229, %s229
                $region61: #{mixhop_forward.5} parent=50 // loop_header_branch
                  %299 = sbr.rel (%p297) target = $region65
                $region62: #{mixhop_forward.5} parent=50 // loop_body
                  %v303 = vld [vmem:[%s301] sm:%s294]
                  %304 = vst [vmem:[%s302] sm:%s294] %v303
                  %v305 = vld [vmem:[%s301 + $0xc] sm:%s294]
                  %306 = vst [vmem:[%s302 + $0x4] sm:%s294] %v305
                  %v307 = vld [vmem:[%s301 + $0x18] sm:%s294]
                  %308 = vst [vmem:[%s302 + $0x8] sm:%s294] %v307
                  %v309 = vld [vmem:[%s301 + $0x24] sm:%s294]
                  %310 = vst [vmem:[%s302 + $0xc] sm:%s294] %v309
                  %v311 = vld [vmem:[%s301 + $0x30] sm:%s294]
                  %312 = vst [vmem:[%s302 + $0x10] sm:%s294] %v311
                  %v313 = vld [vmem:[%s301 + $0x3c] sm:%s294]
                  %314 = vst [vmem:[%s302 + $0x14] sm:%s294] %v313
                  %v315 = vld [vmem:[%s301 + $0x48] sm:%s294]
                  %316 = vst [vmem:[%s302 + $0x18] sm:%s294] %v315
                  %v317 = vld [vmem:[%s301 + $0x54] sm:%s294]
                  %318 = vst [vmem:[%s302 + $0x1c] sm:%s294] %v317
                  %v319 = vld [vmem:[%s301 + $0x60] sm:%s294]
                  %320 = vst [vmem:[%s302 + $0x20] sm:%s294] %v319
                  %v321 = vld [vmem:[%s301 + $0x6c] sm:%s294]
                  %322 = vst [vmem:[%s302 + $0x24] sm:%s294] %v321
                  %v323 = vld [vmem:[%s301 + $0x78] sm:%s294]
                  %324 = vst [vmem:[%s302 + $0x28] sm:%s294] %v323
                  %v325 = vld [vmem:[%s301 + $0x84] sm:%s294]
                  %326 = vst [vmem:[%s302 + $0x2c] sm:%s294] %v325
                  %v327 = vld [vmem:[%s301 + $0x90] sm:%s294]
                  %328 = vst [vmem:[%s302 + $0x30] sm:%s294] %v327
                  %v329 = vld [vmem:[%s301 + $0x9c] sm:%s294]
                  %330 = vst [vmem:[%s302 + $0x34] sm:%s294] %v329
                  %v331 = vld [vmem:[%s301 + $0xa8] sm:%s294]
                  %332 = vst [vmem:[%s302 + $0x38] sm:%s294] %v331
                  %v333 = vld [vmem:[%s301 + $0xb4] sm:%s294]
                  %334 = vst [vmem:[%s302 + $0x3c] sm:%s294] %v333
                $region63: #{mixhop_forward.5} parent=50 // loop_footer
                  %s300 = sadd.s32 1, %s296
                $region64: #{mixhop_forward.5} parent=50 // loop_footer_branch
                  %295 = sbr.rel target = $region60
                $region65: #{mixhop_forward.5} parent=50 // loop_exit
                  _
              $region51: #{mixhop_forward.5} parent=35 // pred_fallthru
                _
            $region36: #{mixhop_forward.5} parent=31 // pred_fallthru
              _
            // Predicated region
            $region37: #{mixhop_forward.5} parent=31 // pred_check
              _
            $region38: #{mixhop_forward.5} parent=31 // pred_check_branch
              %240 = sbr.rel (0) target = $region40
            $region39: #{mixhop_forward.5} parent=31 // pred_region
              %s242 = ssub.s32 16, 1
              loop: start=0, step=1, limit=1
              $region41: #{mixhop_forward.5} parent=39 // loop_pre_header
                _
              $region42: #{mixhop_forward.5} parent=39 // loop_header
                %s244 = sphi 0, %s248
                %p245 = scmp.ge.s32.totalorder %s244, 1
                %s249 = sphi %s234, %s234
                %s250 = sphi %s229, %s229
              $region43: #{mixhop_forward.5} parent=39 // loop_header_branch
                %247 = sbr.rel (%p245) target = $region47
              $region44: #{mixhop_forward.5} parent=39 // loop_body
                %v251 = vld [vmem:[%s249] sm:%s242]
                %252 = vst [vmem:[%s250] sm:%s242] %v251
                %v253 = vld [vmem:[%s249 + $0xc] sm:%s242]
                %254 = vst [vmem:[%s250 + $0x4] sm:%s242] %v253
                %v255 = vld [vmem:[%s249 + $0x18] sm:%s242]
                %256 = vst [vmem:[%s250 + $0x8] sm:%s242] %v255
                %v257 = vld [vmem:[%s249 + $0x24] sm:%s242]
                %258 = vst [vmem:[%s250 + $0xc] sm:%s242] %v257
                %v259 = vld [vmem:[%s249 + $0x30] sm:%s242]
                %260 = vst [vmem:[%s250 + $0x10] sm:%s242] %v259
                %v261 = vld [vmem:[%s249 + $0x3c] sm:%s242]
                %262 = vst [vmem:[%s250 + $0x14] sm:%s242] %v261
                %v263 = vld [vmem:[%s249 + $0x48] sm:%s242]
                %264 = vst [vmem:[%s250 + $0x18] sm:%s242] %v263
                %v265 = vld [vmem:[%s249 + $0x54] sm:%s242]
                %266 = vst [vmem:[%s250 + $0x1c] sm:%s242] %v265
                %v267 = vld [vmem:[%s249 + $0x60] sm:%s242]
                %268 = vst [vmem:[%s250 + $0x20] sm:%s242] %v267
                %v269 = vld [vmem:[%s249 + $0x6c] sm:%s242]
                %270 = vst [vmem:[%s250 + $0x24] sm:%s242] %v269
                %v271 = vld [vmem:[%s249 + $0x78] sm:%s242]
                %272 = vst [vmem:[%s250 + $0x28] sm:%s242] %v271
                %v273 = vld [vmem:[%s249 + $0x84] sm:%s242]
                %274 = vst [vmem:[%s250 + $0x2c] sm:%s242] %v273
                %v275 = vld [vmem:[%s249 + $0x90] sm:%s242]
                %276 = vst [vmem:[%s250 + $0x30] sm:%s242] %v275
                %v277 = vld [vmem:[%s249 + $0x9c] sm:%s242]
                %278 = vst [vmem:[%s250 + $0x34] sm:%s242] %v277
                %v279 = vld [vmem:[%s249 + $0xa8] sm:%s242]
                %280 = vst [vmem:[%s250 + $0x38] sm:%s242] %v279
                %v281 = vld [vmem:[%s249 + $0xb4] sm:%s242]
                %282 = vst [vmem:[%s250 + $0x3c] sm:%s242] %v281
              $region45: #{mixhop_forward.5} parent=39 // loop_footer
                %s248 = sadd.s32 1, %s244
              $region46: #{mixhop_forward.5} parent=39 // loop_footer_branch
                %243 = sbr.rel target = $region42
              $region47: #{mixhop_forward.5} parent=39 // loop_exit
                _
            $region40: #{mixhop_forward.5} parent=31 // pred_fallthru
              _
          $region32: #{mixhop_forward.5} parent=27 // pred_fallthru
            _
          %335 = vnop
        $region28: #{mixhop_forward.5} parent=23 // pred_fallthru
          _
        // Predicated region
        $region66: #{mixhop_forward.5} parent=23 // pred_check
          %p336 = pneg %p72
        $region67: #{mixhop_forward.5} parent=23 // pred_check_branch
          %338 = sbr.rel (%p336) target = $region69
        $region68: #{mixhop_forward.5} parent=23 // pred_region
          %s339 = smul.u32 16, %s20
          %p340 = scmp.lt.s32.totalorder %s339, 47
          %s341 = scalar_select %p340, %s339, 47
          %s342 = smul.addr %s341, 4
          %s343 = scalar_lea.vmem %s1, %s342
          %s344 = smul.u32 16, %s20
        $region69: #{mixhop_forward.5} parent=23 // pred_fallthru
          _
        // Predicated region
        $region70: #{mixhop_forward.5} parent=23 // pred_check
          %p345 = pneg %p98
        $region71: #{mixhop_forward.5} parent=23 // pred_check_branch
          %347 = sbr.rel (%p345) target = $region73
        $region72: #{mixhop_forward.5} parent=23 // pred_region
          %s348 = smul.u32 16, %s19
          %p349 = scmp.lt.s32.totalorder %s348, 47
          %s350 = scalar_select %p349, %s348, 47
          %s351 = smul.addr %s350, 4
          %s352 = scalar_lea.vmem %s2, %s351
          %s353 = smul.u32 16, %s19
        $region73: #{mixhop_forward.5} parent=23 // pred_fallthru
          _
        // Predicated region
        $region74: #{mixhop_forward.5} parent=23 // pred_check
          %p354 = pneg %p124
        $region75: #{mixhop_forward.5} parent=23 // pred_check_branch
          %356 = sbr.rel (%p354) target = $region77
        $region76: #{mixhop_forward.5} parent=23 // pred_region
          %s357 = smul.u32 16, %s19
          %p358 = scmp.lt.s32.totalorder %s357, 47
          %s359 = scalar_select %p358, %s357, 47
          %s360 = smul.addr %s359, 4
          %s361 = scalar_lea.vmem %s3, %s360
          %s362 = smul.u32 16, %s19
        $region77: #{mixhop_forward.5} parent=23 // pred_fallthru
          _
      $region24: #{mixhop_forward.5} parent=5 // pred_fallthru
        _
      %p363 = scmp.le.s32.totalorder 1, %s12
      %p364 = scmp.lt.s32.totalorder %s12, 10
      %p365 = pnand %p363, %p364
      %p366 = pneg %p365
      // Predicated region
      $region78: #{mixhop_forward.5} parent=5 // pred_check
        _
      $region79: #{mixhop_forward.5} parent=5 // pred_check_branch
        %368 = sbr.rel (%p365) target = $region81
      $region80: #{mixhop_forward.5} parent=5 // pred_region
        %s369 = ssub.s32 %s12, 1
        %s370 = sand.u32 %s39, 1
        %s371 = sand.u32 %s39, 1
        %s372 = smul.addr %s371, 64
        %s373 = scalar_lea.vmem [#allocation4], %s372
        // Predicated region
        $region82: #{mixhop_forward.5} parent=80 // pred_check
          %p374 = pneg %p52
        $region83: #{mixhop_forward.5} parent=80 // pred_check_branch
          %376 = sbr.rel (%p374) target = $region85
        $region84: #{mixhop_forward.5} parent=80 // pred_region
          _
        $region85: #{mixhop_forward.5} parent=80 // pred_fallthru
          _
        %s377 = sand.u32 %s39, 1
        %s378 = sand.u32 %s39, 1
        %s379 = smul.addr %s378, 64
        %s380 = scalar_lea.vmem [#allocation4], %s379
        %p381 = pneg %p52
        %p382 = pneg %p49
        %s383 = smul.u32 16, %s22
        %p384 = scmp.lt.s32.totalorder %s383, 47
        %s385 = scalar_select %p384, %s383, 47
        %s386 = smul.addr %s385, 4
        %s387 = scalar_lea.vmem %s1, %s386
        %p388 = pneg %p78
        %p389 = pneg %p75
        %s390 = smul.u32 16, %s21
        %p391 = scmp.lt.s32.totalorder %s390, 47
        %s392 = scalar_select %p391, %s390, 47
        %s393 = smul.addr %s392, 4
        %s394 = scalar_lea.vmem %s2, %s393
        %p395 = pneg %p104
        %p396 = pneg %p101
        %s397 = smul.u32 16, %s21
        %p398 = scmp.lt.s32.totalorder %s397, 47
        %s399 = scalar_select %p398, %s397, 47
        %s400 = smul.addr %s399, 4
        %s401 = scalar_lea.vmem %s3, %s400
        %p402 = pneg %p130
        %p403 = pneg %p127
        %p404 = pneg %p151
        %p405 = pneg %p148
        %p406 = pneg %p172
        %p407 = pneg %p169
        %p408 = pneg %p198
        %p409 = pneg %p195
        %s410 = smul.u32 16, %s21
        %p411 = scmp.lt.s32.totalorder %s410, 47
        %s412 = scalar_select %p411, %s410, 47
        %s413 = smul.addr %s412, 8
        %s414 = scalar_lea.vmem %s6, %s413
        %s415 = smul.u32 16, %s21
        %s416 = smul.u32 16, %s22
        %p417 = scmp.lt.s32.totalorder %s416, 47
        %s418 = scalar_select %p417, %s416, 47
        %s419 = smul.addr %s418, 4
        %s420 = scalar_lea.vmem %s1, %s419
        %s421 = smul.u32 16, %s22
        %s422 = smul.u32 16, %s21
        %p423 = scmp.lt.s32.totalorder %s422, 47
        %s424 = scalar_select %p423, %s422, 47
        %s425 = smul.addr %s424, 4
        %s426 = scalar_lea.vmem %s2, %s425
        %s427 = smul.u32 16, %s21
        %s428 = smul.u32 16, %s21
        %p429 = scmp.lt.s32.totalorder %s428, 47
        %s430 = scalar_select %p429, %s428, 47
        %s431 = smul.addr %s430, 4
        %s432 = scalar_lea.vmem %s3, %s431
        %s433 = smul.u32 16, %s21
        %s434 = smul.u32 16, %s21
        %p435 = scmp.lt.s32.totalorder %s434, 47
        %s436 = scalar_select %p435, %s434, 47
        %s437 = smul.addr %s436, 8
        %s438 = scalar_lea.vmem %s6, %s437
        %s439 = smul.u32 16, %s21
        %p440 = scmp.eq.s32.totalorder %s22, 0
        // Predicated region
        $region86: #{mixhop_forward.5} parent=80 // pred_check
          %p441 = pneg %p440
        $region87: #{mixhop_forward.5} parent=80 // pred_check_branch
          %443 = sbr.rel (%p441) target = $region89
        $region88: #{mixhop_forward.5} parent=80 // pred_region
          %444 = vst [vmem:[#allocation2] sm:$0xff] 0.0
          %445 = vst [vmem:[#allocation2 + $0x8] sm:$0xff] 0.0
          %446 = vst [vmem:[#allocation2 + $0x10] sm:$0xff] 0.0
          %447 = vst [vmem:[#allocation2 + $0x18] sm:$0xff] 0.0
          %448 = vst [vmem:[#allocation2 + $0x20] sm:$0xff] 0.0
          %449 = vst [vmem:[#allocation2 + $0x28] sm:$0xff] 0.0
          %450 = vst [vmem:[#allocation2 + $0x30] sm:$0xff] 0.0
          %451 = vst [vmem:[#allocation2 + $0x38] sm:$0xff] 0.0
          %452 = vst [vmem:[#allocation2 + $0x40] sm:$0xff] 0.0
          %453 = vst [vmem:[#allocation2 + $0x48] sm:$0xff] 0.0
          %454 = vst [vmem:[#allocation2 + $0x50] sm:$0xff] 0.0
          %455 = vst [vmem:[#allocation2 + $0x58] sm:$0xff] 0.0
          %456 = vst [vmem:[#allocation2 + $0x60] sm:$0xff] 0.0
          %457 = vst [vmem:[#allocation2 + $0x68] sm:$0xff] 0.0
          %458 = vst [vmem:[#allocation2 + $0x70] sm:$0xff] 0.0
          %459 = vst [vmem:[#allocation2 + $0x78] sm:$0xff] 0.0
        $region89: #{mixhop_forward.5} parent=80 // pred_fallthru
          _
        %v460 = vld [vmem:[#allocation2] sm:$0xff]
        %v461 = vld [vmem:[#allocation2 + $0x8] sm:$0xff]
        %v462 = vld [vmem:[#allocation2 + $0x10] sm:$0xff]
        %v463 = vld [vmem:[#allocation2 + $0x18] sm:$0xff]
        %v464 = vld [vmem:[#allocation2 + $0x20] sm:$0xff]
        %v465 = vld [vmem:[#allocation2 + $0x28] sm:$0xff]
        %v466 = vld [vmem:[#allocation2 + $0x30] sm:$0xff]
        %v467 = vld [vmem:[#allocation2 + $0x38] sm:$0xff]
        %v468 = vld [vmem:[#allocation2 + $0x40] sm:$0xff]
        %v469 = vld [vmem:[#allocation2 + $0x48] sm:$0xff]
        %v470 = vld [vmem:[#allocation2 + $0x50] sm:$0xff]
        %v471 = vld [vmem:[#allocation2 + $0x58] sm:$0xff]
        %v472 = vld [vmem:[#allocation2 + $0x60] sm:$0xff]
        %v473 = vld [vmem:[#allocation2 + $0x68] sm:$0xff]
        %v474 = vld [vmem:[#allocation2 + $0x70] sm:$0xff]
        %v475 = vld [vmem:[#allocation2 + $0x78] sm:$0xff]
        %v476 = vld [vmem:[%s373] sm:$0xf]
        %v477 = vld [vmem:[%s373 + $0x4] sm:$0xf]
        %v478 = vld [vmem:[%s373 + $0x8] sm:$0xf]
        %v479 = vld [vmem:[%s373 + $0xc] sm:$0xf]
        %v480 = vld [vmem:[%s373 + $0x10] sm:$0xf]
        %v481 = vld [vmem:[%s373 + $0x14] sm:$0xf]
        %v482 = vld [vmem:[%s373 + $0x18] sm:$0xf]
        %v483 = vld [vmem:[%s373 + $0x1c] sm:$0xf]
        %v484 = vld [vmem:[%s373 + $0x20] sm:$0xf]
        %v485 = vld [vmem:[%s373 + $0x24] sm:$0xf]
        %v486 = vld [vmem:[%s373 + $0x28] sm:$0xf]
        %v487 = vld [vmem:[%s373 + $0x2c] sm:$0xf]
        %v488 = vld [vmem:[%s373 + $0x30] sm:$0xf]
        %v489 = vld [vmem:[%s373 + $0x34] sm:$0xf]
        %v490 = vld [vmem:[%s373 + $0x38] sm:$0xf]
        %v491 = vld [vmem:[%s373 + $0x3c] sm:$0xf]
        %v492 = vld [vmem:[%s420] sm:$0xf]
        %v493 = vld [vmem:[%s420 + $0x4] sm:$0xf]
        %v494 = vld [vmem:[%s420 + $0x8] sm:$0xf]
        %v495 = vld [vmem:[%s420 + $0xc] sm:$0xf]
        %v496 = vld [vmem:[%s420 + $0x10] sm:$0xf]
        %v497 = vld [vmem:[%s420 + $0x14] sm:$0xf]
        %v498 = vld [vmem:[%s420 + $0x18] sm:$0xf]
        %v499 = vld [vmem:[%s420 + $0x1c] sm:$0xf]
        %v500 = vld [vmem:[%s420 + $0x20] sm:$0xf]
        %v501 = vld [vmem:[%s420 + $0x24] sm:$0xf]
        %v502 = vld [vmem:[%s420 + $0x28] sm:$0xf]
        %v503 = vld [vmem:[%s420 + $0x2c] sm:$0xf]
        %v504 = vld [vmem:[%s420 + $0x30] sm:$0xf]
        %v505 = vld [vmem:[%s420 + $0x34] sm:$0xf]
        %v506 = vld [vmem:[%s420 + $0x38] sm:$0xf]
        %v507 = vld [vmem:[%s420 + $0x3c] sm:$0xf]
        %v524 = vunpack.c.l.b16 %v476
        %v525 = vunpack.c.l.b16 %v477
        %v526 = vunpack.c.l.b16 %v478
        %v527 = vunpack.c.l.b16 %v479
        %v528 = vunpack.c.l.b16 %v480
        %v529 = vunpack.c.l.b16 %v481
        %v530 = vunpack.c.l.b16 %v482
        %v531 = vunpack.c.l.b16 %v483
        %v532 = vunpack.c.l.b16 %v484
        %v533 = vunpack.c.l.b16 %v485
        %v534 = vunpack.c.l.b16 %v486
        %v535 = vunpack.c.l.b16 %v487
        %v536 = vunpack.c.l.b16 %v488
        %v537 = vunpack.c.l.b16 %v489
        %v538 = vunpack.c.l.b16 %v490
        %v539 = vunpack.c.l.b16 %v491
        %v540 = vpack.c.b16 %v525, %v524
        %v541 = vpack.c.b16 %v527, %v526
        %v542 = vpack.c.b16 %v529, %v528
        %v543 = vpack.c.b16 %v531, %v530
        %v544 = vpack.c.b16 %v533, %v532
        %v545 = vpack.c.b16 %v535, %v534
        %v546 = vpack.c.b16 %v537, %v536
        %v547 = vpack.c.b16 %v539, %v538
        %v572 = vunpack.c.l.b16 %v492
        %v573 = vunpack.c.l.b16 %v493
        %v574 = vunpack.c.l.b16 %v494
        %v575 = vunpack.c.l.b16 %v495
        %v576 = vunpack.c.l.b16 %v496
        %v577 = vunpack.c.l.b16 %v497
        %v578 = vunpack.c.l.b16 %v498
        %v579 = vunpack.c.l.b16 %v499
        %v580 = vunpack.c.l.b16 %v500
        %v581 = vunpack.c.l.b16 %v501
        %v582 = vunpack.c.l.b16 %v502
        %v583 = vunpack.c.l.b16 %v503
        %v584 = vunpack.c.l.b16 %v504
        %v585 = vunpack.c.l.b16 %v505
        %v586 = vunpack.c.l.b16 %v506
        %v587 = vunpack.c.l.b16 %v507
        %v588 = vpack.c.b16 %v573, %v572
        %v589 = vpack.c.b16 %v575, %v574
        %v590 = vpack.c.b16 %v577, %v576
        %v591 = vpack.c.b16 %v579, %v578
        %v592 = vpack.c.b16 %v581, %v580
        %v593 = vpack.c.b16 %v583, %v582
        %v594 = vpack.c.b16 %v585, %v584
        %v595 = vpack.c.b16 %v587, %v586
        %604 = vmatpush.bf16.msra.mxu0 %v595
        %605 = vmatpush.bf16.msra.mxu0 %v594
        %606 = vmatpush.bf16.msra.mxu0 %v593
        %607 = vmatpush.bf16.msra.mxu0 %v592
        %608 = vmatpush.bf16.msra.mxu0 %v591
        %609 = vmatpush.bf16.msra.mxu0 %v590
        %610 = vmatpush.bf16.msra.mxu0 %v589
        %611 = vmatpush.bf16.msra.mxu0 %v588
        %612 = vmatmul.bf16.gmra.mxu0 %v540
        %v613 = vpop.f32.mrf.mxu0
        %v614 = vadd.f32 0.0, %v613
        %v615 = vpop.f32.mrf.mxu0
        %v616 = vadd.f32 0.0, %v615
        %617 = vmatmul.bf16.gmra.mxu0 %v541
        %v618 = vpop.f32.mrf.mxu0
        %v619 = vadd.f32 0.0, %v618
        %v620 = vpop.f32.mrf.mxu0
        %v621 = vadd.f32 0.0, %v620
        %622 = vmatmul.bf16.gmra.mxu0 %v542
        %v623 = vpop.f32.mrf.mxu0
        %v624 = vadd.f32 0.0, %v623
        %v625 = vpop.f32.mrf.mxu0
        %v626 = vadd.f32 0.0, %v625
        %627 = vmatmul.bf16.gmra.mxu0 %v543
        %v628 = vpop.f32.mrf.mxu0
        %v629 = vadd.f32 0.0, %v628
        %v630 = vpop.f32.mrf.mxu0
        %v631 = vadd.f32 0.0, %v630
        %632 = vmatmul.bf16.gmra.mxu0 %v544
        %v633 = vpop.f32.mrf.mxu0
        %v634 = vadd.f32 0.0, %v633
        %v635 = vpop.f32.mrf.mxu0
        %v636 = vadd.f32 0.0, %v635
        %637 = vmatmul.bf16.gmra.mxu0 %v545
        %v638 = vpop.f32.mrf.mxu0
        %v639 = vadd.f32 0.0, %v638
        %v640 = vpop.f32.mrf.mxu0
        %v641 = vadd.f32 0.0, %v640
        %642 = vmatmul.bf16.gmra.mxu0 %v546
        %v643 = vpop.f32.mrf.mxu0
        %v644 = vadd.f32 0.0, %v643
        %v645 = vpop.f32.mrf.mxu0
        %v646 = vadd.f32 0.0, %v645
        %647 = vmatmul.bf16.gmra.mxu0 %v547
        %v648 = vpop.f32.mrf.mxu0
        %v649 = vadd.f32 0.0, %v648
        %v650 = vpop.f32.mrf.mxu0
        %v651 = vadd.f32 0.0, %v650
        %652 = vdwg.mxu0
        %v653 = vadd.f32 %v460, %v614
        %v654 = vadd.f32 %v461, %v616
        %v655 = vadd.f32 %v462, %v619
        %v656 = vadd.f32 %v463, %v621
        %v657 = vadd.f32 %v464, %v624
        %v658 = vadd.f32 %v465, %v626
        %v659 = vadd.f32 %v466, %v629
        %v660 = vadd.f32 %v467, %v631
        %v661 = vadd.f32 %v468, %v634
        %v662 = vadd.f32 %v469, %v636
        %v663 = vadd.f32 %v470, %v639
        %v664 = vadd.f32 %v471, %v641
        %v665 = vadd.f32 %v472, %v644
        %v666 = vadd.f32 %v473, %v646
        %v667 = vadd.f32 %v474, %v649
        %v668 = vadd.f32 %v475, %v651
        %669 = vst [vmem:[#allocation2] sm:$0xff] %v653
        %670 = vst [vmem:[#allocation2 + $0x8] sm:$0xff] %v654
        %671 = vst [vmem:[#allocation2 + $0x10] sm:$0xff] %v655
        %672 = vst [vmem:[#allocation2 + $0x18] sm:$0xff] %v656
        %673 = vst [vmem:[#allocation2 + $0x20] sm:$0xff] %v657
        %674 = vst [vmem:[#allocation2 + $0x28] sm:$0xff] %v658
        %675 = vst [vmem:[#allocation2 + $0x30] sm:$0xff] %v659
        %676 = vst [vmem:[#allocation2 + $0x38] sm:$0xff] %v660
        %677 = vst [vmem:[#allocation2 + $0x40] sm:$0xff] %v661
        %678 = vst [vmem:[#allocation2 + $0x48] sm:$0xff] %v662
        %679 = vst [vmem:[#allocation2 + $0x50] sm:$0xff] %v663
        %680 = vst [vmem:[#allocation2 + $0x58] sm:$0xff] %v664
        %681 = vst [vmem:[#allocation2 + $0x60] sm:$0xff] %v665
        %682 = vst [vmem:[#allocation2 + $0x68] sm:$0xff] %v666
        %683 = vst [vmem:[#allocation2 + $0x70] sm:$0xff] %v667
        %684 = vst [vmem:[#allocation2 + $0x78] sm:$0xff] %v668
        %p685 = scmp.eq.s32.totalorder %s22, 2
        // Predicated region
        $region90: #{mixhop_forward.5} parent=80 // pred_check
          %p686 = pneg %p685
        $region91: #{mixhop_forward.5} parent=80 // pred_check_branch
          %688 = sbr.rel (%p686) target = $region93
        $region92: #{mixhop_forward.5} parent=80 // pred_region
          %v689 = vld [vmem:[%s426] sm:$0xf]
          %v690 = vld [vmem:[%s426 + $0x4] sm:$0xf]
          %v691 = vld [vmem:[%s426 + $0x8] sm:$0xf]
          %v692 = vld [vmem:[%s426 + $0xc] sm:$0xf]
          %v693 = vld [vmem:[%s426 + $0x10] sm:$0xf]
          %v694 = vld [vmem:[%s426 + $0x14] sm:$0xf]
          %v695 = vld [vmem:[%s426 + $0x18] sm:$0xf]
          %v696 = vld [vmem:[%s426 + $0x1c] sm:$0xf]
          %v697 = vld [vmem:[%s426 + $0x20] sm:$0xf]
          %v698 = vld [vmem:[%s426 + $0x24] sm:$0xf]
          %v699 = vld [vmem:[%s426 + $0x28] sm:$0xf]
          %v700 = vld [vmem:[%s426 + $0x2c] sm:$0xf]
          %v701 = vld [vmem:[%s426 + $0x30] sm:$0xf]
          %v702 = vld [vmem:[%s426 + $0x34] sm:$0xf]
          %v703 = vld [vmem:[%s426 + $0x38] sm:$0xf]
          %v704 = vld [vmem:[%s426 + $0x3c] sm:$0xf]
          %v705 = vunpack.c.l.bf16 %v689
          %v706 = vunpack.c.l.bf16 %v690
          %v707 = vunpack.c.l.bf16 %v691
          %v708 = vunpack.c.l.bf16 %v692
          %v709 = vunpack.c.l.bf16 %v693
          %v710 = vunpack.c.l.bf16 %v694
          %v711 = vunpack.c.l.bf16 %v695
          %v712 = vunpack.c.l.bf16 %v696
          %v713 = vunpack.c.l.bf16 %v697
          %v714 = vunpack.c.l.bf16 %v698
          %v715 = vunpack.c.l.bf16 %v699
          %v716 = vunpack.c.l.bf16 %v700
          %v717 = vunpack.c.l.bf16 %v701
          %v718 = vunpack.c.l.bf16 %v702
          %v719 = vunpack.c.l.bf16 %v703
          %v720 = vunpack.c.l.bf16 %v704
          %v721 = vmax.f32 %v705, 0.0
          %v722 = vmax.f32 %v706, 0.0
          %v723 = vmax.f32 %v707, 0.0
          %v724 = vmax.f32 %v708, 0.0
          %v725 = vmax.f32 %v709, 0.0
          %v726 = vmax.f32 %v710, 0.0
          %v727 = vmax.f32 %v711, 0.0
          %v728 = vmax.f32 %v712, 0.0
          %v729 = vmax.f32 %v713, 0.0
          %v730 = vmax.f32 %v714, 0.0
          %v731 = vmax.f32 %v715, 0.0
          %v732 = vmax.f32 %v716, 0.0
          %v733 = vmax.f32 %v717, 0.0
          %v734 = vmax.f32 %v718, 0.0
          %v735 = vmax.f32 %v719, 0.0
          %v736 = vmax.f32 %v720, 0.0
          %v737 = vpack.c.bf16 %v721, %v721
          %v738 = vpack.c.bf16 %v722, %v722
          %v739 = vpack.c.bf16 %v723, %v723
          %v740 = vpack.c.bf16 %v724, %v724
          %v741 = vpack.c.bf16 %v725, %v725
          %v742 = vpack.c.bf16 %v726, %v726
          %v743 = vpack.c.bf16 %v727, %v727
          %v744 = vpack.c.bf16 %v728, %v728
          %v745 = vpack.c.bf16 %v729, %v729
          %v746 = vpack.c.bf16 %v730, %v730
          %v747 = vpack.c.bf16 %v731, %v731
          %v748 = vpack.c.bf16 %v732, %v732
          %v749 = vpack.c.bf16 %v733, %v733
          %v750 = vpack.c.bf16 %v734, %v734
          %v751 = vpack.c.bf16 %v735, %v735
          %v752 = vpack.c.bf16 %v736, %v736
          %v753 = vld [vmem:[%s432] sm:$0xf]
          %v754 = vld [vmem:[%s432 + $0x4] sm:$0xf]
          %v755 = vld [vmem:[%s432 + $0x8] sm:$0xf]
          %v756 = vld [vmem:[%s432 + $0xc] sm:$0xf]
          %v757 = vld [vmem:[%s432 + $0x10] sm:$0xf]
          %v758 = vld [vmem:[%s432 + $0x14] sm:$0xf]
          %v759 = vld [vmem:[%s432 + $0x18] sm:$0xf]
          %v760 = vld [vmem:[%s432 + $0x1c] sm:$0xf]
          %v761 = vld [vmem:[%s432 + $0x20] sm:$0xf]
          %v762 = vld [vmem:[%s432 + $0x24] sm:$0xf]
          %v763 = vld [vmem:[%s432 + $0x28] sm:$0xf]
          %v764 = vld [vmem:[%s432 + $0x2c] sm:$0xf]
          %v765 = vld [vmem:[%s432 + $0x30] sm:$0xf]
          %v766 = vld [vmem:[%s432 + $0x34] sm:$0xf]
          %v767 = vld [vmem:[%s432 + $0x38] sm:$0xf]
          %v768 = vld [vmem:[%s432 + $0x3c] sm:$0xf]
          %v769 = vunpack.c.l.bf16 %v753
          %v770 = vunpack.c.l.bf16 %v754
          %v771 = vunpack.c.l.bf16 %v755
          %v772 = vunpack.c.l.bf16 %v756
          %v773 = vunpack.c.l.bf16 %v757
          %v774 = vunpack.c.l.bf16 %v758
          %v775 = vunpack.c.l.bf16 %v759
          %v776 = vunpack.c.l.bf16 %v760
          %v777 = vunpack.c.l.bf16 %v761
          %v778 = vunpack.c.l.bf16 %v762
          %v779 = vunpack.c.l.bf16 %v763
          %v780 = vunpack.c.l.bf16 %v764
          %v781 = vunpack.c.l.bf16 %v765
          %v782 = vunpack.c.l.bf16 %v766
          %v783 = vunpack.c.l.bf16 %v767
          %v784 = vunpack.c.l.bf16 %v768
          %v785 = vmax.f32 %v769, 0.0
          %v786 = vmax.f32 %v770, 0.0
          %v787 = vmax.f32 %v771, 0.0
          %v788 = vmax.f32 %v772, 0.0
          %v789 = vmax.f32 %v773, 0.0
          %v790 = vmax.f32 %v774, 0.0
          %v791 = vmax.f32 %v775, 0.0
          %v792 = vmax.f32 %v776, 0.0
          %v793 = vmax.f32 %v777, 0.0
          %v794 = vmax.f32 %v778, 0.0
          %v795 = vmax.f32 %v779, 0.0
          %v796 = vmax.f32 %v780, 0.0
          %v797 = vmax.f32 %v781, 0.0
          %v798 = vmax.f32 %v782, 0.0
          %v799 = vmax.f32 %v783, 0.0
          %v800 = vmax.f32 %v784, 0.0
          %v801 = vpack.c.bf16 %v785, %v785
          %v802 = vpack.c.bf16 %v786, %v786
          %v803 = vpack.c.bf16 %v787, %v787
          %v804 = vpack.c.bf16 %v788, %v788
          %v805 = vpack.c.bf16 %v789, %v789
          %v806 = vpack.c.bf16 %v790, %v790
          %v807 = vpack.c.bf16 %v791, %v791
          %v808 = vpack.c.bf16 %v792, %v792
          %v809 = vpack.c.bf16 %v793, %v793
          %v810 = vpack.c.bf16 %v794, %v794
          %v811 = vpack.c.bf16 %v795, %v795
          %v812 = vpack.c.bf16 %v796, %v796
          %v813 = vpack.c.bf16 %v797, %v797
          %v814 = vpack.c.bf16 %v798, %v798
          %v815 = vpack.c.bf16 %v799, %v799
          %v816 = vpack.c.bf16 %v800, %v800
          %v817 = vld [vmem:[#allocation2] sm:$0xff]
          %v818 = vld [vmem:[#allocation2 + $0x8] sm:$0xff]
          %v819 = vld [vmem:[#allocation2 + $0x10] sm:$0xff]
          %v820 = vld [vmem:[#allocation2 + $0x18] sm:$0xff]
          %v821 = vld [vmem:[#allocation2 + $0x20] sm:$0xff]
          %v822 = vld [vmem:[#allocation2 + $0x28] sm:$0xff]
          %v823 = vld [vmem:[#allocation2 + $0x30] sm:$0xff]
          %v824 = vld [vmem:[#allocation2 + $0x38] sm:$0xff]
          %v825 = vld [vmem:[#allocation2 + $0x40] sm:$0xff]
          %v826 = vld [vmem:[#allocation2 + $0x48] sm:$0xff]
          %v827 = vld [vmem:[#allocation2 + $0x50] sm:$0xff]
          %v828 = vld [vmem:[#allocation2 + $0x58] sm:$0xff]
          %v829 = vld [vmem:[#allocation2 + $0x60] sm:$0xff]
          %v830 = vld [vmem:[#allocation2 + $0x68] sm:$0xff]
          %v831 = vld [vmem:[#allocation2 + $0x70] sm:$0xff]
          %v832 = vld [vmem:[#allocation2 + $0x78] sm:$0xff]
          %v833 = vmax.f32 %v817, 0.0
          %v834 = vmax.f32 %v818, 0.0
          %v835 = vmax.f32 %v819, 0.0
          %v836 = vmax.f32 %v820, 0.0
          %v837 = vmax.f32 %v821, 0.0
          %v838 = vmax.f32 %v822, 0.0
          %v839 = vmax.f32 %v823, 0.0
          %v840 = vmax.f32 %v824, 0.0
          %v841 = vmax.f32 %v825, 0.0
          %v842 = vmax.f32 %v826, 0.0
          %v843 = vmax.f32 %v827, 0.0
          %v844 = vmax.f32 %v828, 0.0
          %v845 = vmax.f32 %v829, 0.0
          %v846 = vmax.f32 %v830, 0.0
          %v847 = vmax.f32 %v831, 0.0
          %v848 = vmax.f32 %v832, 0.0
          %849 = vst [vmem:[#allocation3] sm:$0xf] %v737
          %850 = vst [vmem:[#allocation3 + $0xc] sm:$0xf] %v738
          %851 = vst [vmem:[#allocation3 + $0x18] sm:$0xf] %v739
          %852 = vst [vmem:[#allocation3 + $0x24] sm:$0xf] %v740
          %853 = vst [vmem:[#allocation3 + $0x30] sm:$0xf] %v741
          %854 = vst [vmem:[#allocation3 + $0x3c] sm:$0xf] %v742
          %855 = vst [vmem:[#allocation3 + $0x48] sm:$0xf] %v743
          %856 = vst [vmem:[#allocation3 + $0x54] sm:$0xf] %v744
          %857 = vst [vmem:[#allocation3 + $0x60] sm:$0xf] %v745
          %858 = vst [vmem:[#allocation3 + $0x6c] sm:$0xf] %v746
          %859 = vst [vmem:[#allocation3 + $0x78] sm:$0xf] %v747
          %860 = vst [vmem:[#allocation3 + $0x84] sm:$0xf] %v748
          %861 = vst [vmem:[#allocation3 + $0x90] sm:$0xf] %v749
          %862 = vst [vmem:[#allocation3 + $0x9c] sm:$0xf] %v750
          %863 = vst [vmem:[#allocation3 + $0xa8] sm:$0xf] %v751
          %864 = vst [vmem:[#allocation3 + $0xb4] sm:$0xf] %v752
          %865 = vst [vmem:[#allocation3 + $0x4] sm:$0xf] %v801
          %866 = vst [vmem:[#allocation3 + $0x10] sm:$0xf] %v802
          %867 = vst [vmem:[#allocation3 + $0x1c] sm:$0xf] %v803
          %868 = vst [vmem:[#allocation3 + $0x28] sm:$0xf] %v804
          %869 = vst [vmem:[#allocation3 + $0x34] sm:$0xf] %v805
          %870 = vst [vmem:[#allocation3 + $0x40] sm:$0xf] %v806
          %871 = vst [vmem:[#allocation3 + $0x4c] sm:$0xf] %v807
          %872 = vst [vmem:[#allocation3 + $0x58] sm:$0xf] %v808
          %873 = vst [vmem:[#allocation3 + $0x64] sm:$0xf] %v809
          %874 = vst [vmem:[#allocation3 + $0x70] sm:$0xf] %v810
          %875 = vst [vmem:[#allocation3 + $0x7c] sm:$0xf] %v811
          %876 = vst [vmem:[#allocation3 + $0x88] sm:$0xf] %v812
          %877 = vst [vmem:[#allocation3 + $0x94] sm:$0xf] %v813
          %878 = vst [vmem:[#allocation3 + $0xa0] sm:$0xf] %v814
          %879 = vst [vmem:[#allocation3 + $0xac] sm:$0xf] %v815
          %880 = vst [vmem:[#allocation3 + $0xb8] sm:$0xf] %v816
          %v881 = vpack.c.bf16 %v833, %v833
          %v882 = vpack.c.bf16 %v834, %v834
          %v883 = vpack.c.bf16 %v835, %v835
          %v884 = vpack.c.bf16 %v836, %v836
          %v885 = vpack.c.bf16 %v837, %v837
          %v886 = vpack.c.bf16 %v838, %v838
          %v887 = vpack.c.bf16 %v839, %v839
          %v888 = vpack.c.bf16 %v840, %v840
          %v889 = vpack.c.bf16 %v841, %v841
          %v890 = vpack.c.bf16 %v842, %v842
          %v891 = vpack.c.bf16 %v843, %v843
          %v892 = vpack.c.bf16 %v844, %v844
          %v893 = vpack.c.bf16 %v845, %v845
          %v894 = vpack.c.bf16 %v846, %v846
          %v895 = vpack.c.bf16 %v847, %v847
          %v896 = vpack.c.bf16 %v848, %v848
          %897 = vst [vmem:[#allocation3 + $0x8] sm:$0xf] %v881
          %898 = vst [vmem:[#allocation3 + $0x14] sm:$0xf] %v882
          %899 = vst [vmem:[#allocation3 + $0x20] sm:$0xf] %v883
          %900 = vst [vmem:[#allocation3 + $0x2c] sm:$0xf] %v884
          %901 = vst [vmem:[#allocation3 + $0x38] sm:$0xf] %v885
          %902 = vst [vmem:[#allocation3 + $0x44] sm:$0xf] %v886
          %903 = vst [vmem:[#allocation3 + $0x50] sm:$0xf] %v887
          %904 = vst [vmem:[#allocation3 + $0x5c] sm:$0xf] %v888
          %905 = vst [vmem:[#allocation3 + $0x68] sm:$0xf] %v889
          %906 = vst [vmem:[#allocation3 + $0x74] sm:$0xf] %v890
          %907 = vst [vmem:[#allocation3 + $0x80] sm:$0xf] %v891
          %908 = vst [vmem:[#allocation3 + $0x8c] sm:$0xf] %v892
          %909 = vst [vmem:[#allocation3 + $0x98] sm:$0xf] %v893
          %910 = vst [vmem:[#allocation3 + $0xa4] sm:$0xf] %v894
          %911 = vst [vmem:[#allocation3 + $0xb0] sm:$0xf] %v895
          %912 = vst [vmem:[#allocation3 + $0xbc] sm:$0xf] %v896
          %v913 = vld [vmem:[#allocation3] sm:$0xff]
          %v914 = vld [vmem:[#allocation3 + $0x8] sm:$0xf]
          %v915 = vld [vmem:[#allocation3 + $0xc] sm:$0xff]
          %v916 = vld [vmem:[#allocation3 + $0x14] sm:$0xf]
          %v917 = vld [vmem:[#allocation3 + $0x18] sm:$0xff]
          %v918 = vld [vmem:[#allocation3 + $0x20] sm:$0xf]
          %v919 = vld [vmem:[#allocation3 + $0x24] sm:$0xff]
          %v920 = vld [vmem:[#allocation3 + $0x2c] sm:$0xf]
          %v921 = vld [vmem:[#allocation3 + $0x30] sm:$0xff]
          %v922 = vld [vmem:[#allocation3 + $0x38] sm:$0xf]
          %v923 = vld [vmem:[#allocation3 + $0x3c] sm:$0xff]
          %v924 = vld [vmem:[#allocation3 + $0x44] sm:$0xf]
          %v925 = vld [vmem:[#allocation3 + $0x48] sm:$0xff]
          %v926 = vld [vmem:[#allocation3 + $0x50] sm:$0xf]
          %v927 = vld [vmem:[#allocation3 + $0x54] sm:$0xff]
          %v928 = vld [vmem:[#allocation3 + $0x5c] sm:$0xf]
          %v929 = vld [vmem:[#allocation3 + $0x60] sm:$0xff]
          %v930 = vld [vmem:[#allocation3 + $0x68] sm:$0xf]
          %v931 = vld [vmem:[#allocation3 + $0x6c] sm:$0xff]
          %v932 = vld [vmem:[#allocation3 + $0x74] sm:$0xf]
          %v933 = vld [vmem:[#allocation3 + $0x78] sm:$0xff]
          %v934 = vld [vmem:[#allocation3 + $0x80] sm:$0xf]
          %v935 = vld [vmem:[#allocation3 + $0x84] sm:$0xff]
          %v936 = vld [vmem:[#allocation3 + $0x8c] sm:$0xf]
          %v937 = vld [vmem:[#allocation3 + $0x90] sm:$0xff]
          %v938 = vld [vmem:[#allocation3 + $0x98] sm:$0xf]
          %v939 = vld [vmem:[#allocation3 + $0x9c] sm:$0xff]
          %v940 = vld [vmem:[#allocation3 + $0xa4] sm:$0xf]
          %v941 = vld [vmem:[#allocation3 + $0xa8] sm:$0xff]
          %v942 = vld [vmem:[#allocation3 + $0xb0] sm:$0xf]
          %v943 = vld [vmem:[#allocation3 + $0xb4] sm:$0xff]
          %v944 = vld [vmem:[#allocation3 + $0xbc] sm:$0xf]
          %v945 = vld [vmem:[%s4] sm:$0xf]
          %v946 = vld [vmem:[%s4 + $0x4] sm:$0xf]
          %v947 = vld [vmem:[%s4 + $0x8] sm:$0xf]
          %v948 = vld [vmem:[%s4 + $0xc] sm:$0xf]
          %v949 = vld [vmem:[%s4 + $0x10] sm:$0xf]
          %v950 = vld [vmem:[%s4 + $0x14] sm:$0xf]
          %v951 = vld [vmem:[%s4 + $0x18] sm:$0xf]
          %v952 = vld [vmem:[%s4 + $0x1c] sm:$0xf]
          %v953 = vld [vmem:[%s4 + $0x20] sm:$0xf]
          %v954 = vld [vmem:[%s4 + $0x24] sm:$0xf]
          %v955 = vld [vmem:[%s4 + $0x28] sm:$0xf]
          %v956 = vld [vmem:[%s4 + $0x2c] sm:$0xf]
          %v957 = vld [vmem:[%s4 + $0x30] sm:$0xf]
          %v958 = vld [vmem:[%s4 + $0x34] sm:$0xf]
          %v959 = vld [vmem:[%s4 + $0x38] sm:$0xf]
          %v960 = vld [vmem:[%s4 + $0x3c] sm:$0xf]
          %v961 = vld [vmem:[%s4 + $0x40] sm:$0xf]
          %v962 = vld [vmem:[%s4 + $0x44] sm:$0xf]
          %v963 = vld [vmem:[%s4 + $0x48] sm:$0xf]
          %v964 = vld [vmem:[%s4 + $0x4c] sm:$0xf]
          %v965 = vld [vmem:[%s4 + $0x50] sm:$0xf]
          %v966 = vld [vmem:[%s4 + $0x54] sm:$0xf]
          %v967 = vld [vmem:[%s4 + $0x58] sm:$0xf]
          %v968 = vld [vmem:[%s4 + $0x5c] sm:$0xf]
          %v969 = vld [vmem:[%s4 + $0x60] sm:$0xf]
          %v970 = vld [vmem:[%s4 + $0x64] sm:$0xf]
          %v971 = vld [vmem:[%s4 + $0x68] sm:$0xf]
          %v972 = vld [vmem:[%s4 + $0x6c] sm:$0xf]
          %v973 = vld [vmem:[%s4 + $0x70] sm:$0xf]
          %v974 = vld [vmem:[%s4 + $0x74] sm:$0xf]
          %v975 = vld [vmem:[%s4 + $0x78] sm:$0xf]
          %v976 = vld [vmem:[%s4 + $0x7c] sm:$0xf]
          %v977 = vld [vmem:[%s4 + $0x80] sm:$0xf]
          %v978 = vld [vmem:[%s4 + $0x84] sm:$0xf]
          %v979 = vld [vmem:[%s4 + $0x88] sm:$0xf]
          %v980 = vld [vmem:[%s4 + $0x8c] sm:$0xf]
          %v981 = vld [vmem:[%s4 + $0x90] sm:$0xf]
          %v982 = vld [vmem:[%s4 + $0x94] sm:$0xf]
          %v983 = vld [vmem:[%s4 + $0x98] sm:$0xf]
          %v984 = vld [vmem:[%s4 + $0x9c] sm:$0xf]
          %v985 = vld [vmem:[%s4 + $0xa0] sm:$0xf]
          %v986 = vld [vmem:[%s4 + $0xa4] sm:$0xf]
          %v987 = vld [vmem:[%s4 + $0xa8] sm:$0xf]
          %v988 = vld [vmem:[%s4 + $0xac] sm:$0xf]
          %v989 = vld [vmem:[%s4 + $0xb0] sm:$0xf]
          %v990 = vld [vmem:[%s4 + $0xb4] sm:$0xf]
          %v991 = vld [vmem:[%s4 + $0xb8] sm:$0xf]
          %v992 = vld [vmem:[%s4 + $0xbc] sm:$0xf]
          %v993 = vld [vmem:[%s5] sm:$0x1]
          %v995 = vperm.slane %v993, 0
          %v1029 = vunpack.c.l.b16 %v913
          %v1030 = vunpack.c.h.b16 %v913
          %v1031 = vunpack.c.l.b16 %v914
          %v1032 = vunpack.c.l.b16 %v915
          %v1033 = vunpack.c.h.b16 %v915
          %v1034 = vunpack.c.l.b16 %v916
          %v1035 = vunpack.c.l.b16 %v917
          %v1036 = vunpack.c.h.b16 %v917
          %v1037 = vunpack.c.l.b16 %v918
          %v1038 = vunpack.c.l.b16 %v919
          %v1039 = vunpack.c.h.b16 %v919
          %v1040 = vunpack.c.l.b16 %v920
          %v1041 = vunpack.c.l.b16 %v921
          %v1042 = vunpack.c.h.b16 %v921
          %v1043 = vunpack.c.l.b16 %v922
          %v1044 = vunpack.c.l.b16 %v923
          %v1045 = vunpack.c.h.b16 %v923
          %v1046 = vunpack.c.l.b16 %v924
          %v1047 = vunpack.c.l.b16 %v925
          %v1048 = vunpack.c.h.b16 %v925
          %v1049 = vunpack.c.l.b16 %v926
          %v1050 = vunpack.c.l.b16 %v927
          %v1051 = vunpack.c.h.b16 %v927
          %v1052 = vunpack.c.l.b16 %v928
          %v1053 = vunpack.c.l.b16 %v929
          %v1054 = vunpack.c.h.b16 %v929
          %v1055 = vunpack.c.l.b16 %v930
          %v1056 = vunpack.c.l.b16 %v931
          %v1057 = vunpack.c.h.b16 %v931
          %v1058 = vunpack.c.l.b16 %v932
          %v1059 = vunpack.c.l.b16 %v933
          %v1060 = vunpack.c.h.b16 %v933
          %v1061 = vunpack.c.l.b16 %v934
          %v1062 = vunpack.c.l.b16 %v935
          %v1063 = vunpack.c.h.b16 %v935
          %v1064 = vunpack.c.l.b16 %v936
          %v1065 = vunpack.c.l.b16 %v937
          %v1066 = vunpack.c.h.b16 %v937
          %v1067 = vunpack.c.l.b16 %v938
          %v1068 = vunpack.c.l.b16 %v939
          %v1069 = vunpack.c.h.b16 %v939
          %v1070 = vunpack.c.l.b16 %v940
          %v1071 = vunpack.c.l.b16 %v941
          %v1072 = vunpack.c.h.b16 %v941
          %v1073 = vunpack.c.l.b16 %v942
          %v1074 = vunpack.c.l.b16 %v943
          %v1075 = vunpack.c.h.b16 %v943
          %v1076 = vunpack.c.l.b16 %v944
          %v1077 = vpack.c.b16 %v1032, %v1029
          %v1078 = vpack.c.b16 %v1033, %v1030
          %v1079 = vpack.c.b16 %v1034, %v1031
          %v1080 = vpack.c.b16 %v1038, %v1035
          %v1081 = vpack.c.b16 %v1039, %v1036
          %v1082 = vpack.c.b16 %v1040, %v1037
          %v1083 = vpack.c.b16 %v1044, %v1041
          %v1084 = vpack.c.b16 %v1045, %v1042
          %v1085 = vpack.c.b16 %v1046, %v1043
          %v1086 = vpack.c.b16 %v1050, %v1047
          %v1087 = vpack.c.b16 %v1051, %v1048
          %v1088 = vpack.c.b16 %v1052, %v1049
          %v1089 = vpack.c.b16 %v1056, %v1053
          %v1090 = vpack.c.b16 %v1057, %v1054
          %v1091 = vpack.c.b16 %v1058, %v1055
          %v1092 = vpack.c.b16 %v1062, %v1059
          %v1093 = vpack.c.b16 %v1063, %v1060
          %v1094 = vpack.c.b16 %v1064, %v1061
          %v1095 = vpack.c.b16 %v1068, %v1065
          %v1096 = vpack.c.b16 %v1069, %v1066
          %v1097 = vpack.c.b16 %v1070, %v1067
          %v1098 = vpack.c.b16 %v1074, %v1071
          %v1099 = vpack.c.b16 %v1075, %v1072
          %v1100 = vpack.c.b16 %v1076, %v1073
          %v1173 = vunpack.c.l.b16 %v945
          %v1174 = vunpack.c.l.b16 %v946
          %v1175 = vunpack.c.l.b16 %v947
          %v1176 = vunpack.c.l.b16 %v948
          %v1177 = vunpack.c.l.b16 %v949
          %v1178 = vunpack.c.l.b16 %v950
          %v1179 = vunpack.c.l.b16 %v951
          %v1180 = vunpack.c.l.b16 %v952
          %v1181 = vunpack.c.l.b16 %v953
          %v1182 = vunpack.c.l.b16 %v954
          %v1183 = vunpack.c.l.b16 %v955
          %v1184 = vunpack.c.l.b16 %v956
          %v1185 = vunpack.c.l.b16 %v957
          %v1186 = vunpack.c.l.b16 %v958
          %v1187 = vunpack.c.l.b16 %v959
          %v1188 = vunpack.c.l.b16 %v960
          %v1189 = vunpack.c.l.b16 %v961
          %v1190 = vunpack.c.l.b16 %v962
          %v1191 = vunpack.c.l.b16 %v963
          %v1192 = vunpack.c.l.b16 %v964
          %v1193 = vunpack.c.l.b16 %v965
          %v1194 = vunpack.c.l.b16 %v966
          %v1195 = vunpack.c.l.b16 %v967
          %v1196 = vunpack.c.l.b16 %v968
          %v1197 = vunpack.c.l.b16 %v969
          %v1198 = vunpack.c.l.b16 %v970
          %v1199 = vunpack.c.l.b16 %v971
          %v1200 = vunpack.c.l.b16 %v972
          %v1201 = vunpack.c.l.b16 %v973
          %v1202 = vunpack.c.l.b16 %v974
          %v1203 = vunpack.c.l.b16 %v975
          %v1204 = vunpack.c.l.b16 %v976
          %v1205 = vunpack.c.l.b16 %v977
          %v1206 = vunpack.c.l.b16 %v978
          %v1207 = vunpack.c.l.b16 %v979
          %v1208 = vunpack.c.l.b16 %v980
          %v1209 = vunpack.c.l.b16 %v981
          %v1210 = vunpack.c.l.b16 %v982
          %v1211 = vunpack.c.l.b16 %v983
          %v1212 = vunpack.c.l.b16 %v984
          %v1213 = vunpack.c.l.b16 %v985
          %v1214 = vunpack.c.l.b16 %v986
          %v1215 = vunpack.c.l.b16 %v987
          %v1216 = vunpack.c.l.b16 %v988
          %v1217 = vunpack.c.l.b16 %v989
          %v1218 = vunpack.c.l.b16 %v990
          %v1219 = vunpack.c.l.b16 %v991
          %v1220 = vunpack.c.l.b16 %v992
          %v1221 = vpack.c.b16 %v1174, %v1173
          %v1222 = vpack.c.b16 %v1176, %v1175
          %v1223 = vpack.c.b16 %v1178, %v1177
          %v1224 = vpack.c.b16 %v1180, %v1179
          %v1225 = vpack.c.b16 %v1182, %v1181
          %v1226 = vpack.c.b16 %v1184, %v1183
          %v1227 = vpack.c.b16 %v1186, %v1185
          %v1228 = vpack.c.b16 %v1188, %v1187
          %v1229 = vpack.c.b16 %v1190, %v1189
          %v1230 = vpack.c.b16 %v1192, %v1191
          %v1231 = vpack.c.b16 %v1194, %v1193
          %v1232 = vpack.c.b16 %v1196, %v1195
          %v1233 = vpack.c.b16 %v1198, %v1197
          %v1234 = vpack.c.b16 %v1200, %v1199
          %v1235 = vpack.c.b16 %v1202, %v1201
          %v1236 = vpack.c.b16 %v1204, %v1203
          %v1237 = vpack.c.b16 %v1206, %v1205
          %v1238 = vpack.c.b16 %v1208, %v1207
          %v1239 = vpack.c.b16 %v1210, %v1209
          %v1240 = vpack.c.b16 %v1212, %v1211
          %v1241 = vpack.c.b16 %v1214, %v1213
          %v1242 = vpack.c.b16 %v1216, %v1215
          %v1243 = vpack.c.b16 %v1218, %v1217
          %v1244 = vpack.c.b16 %v1220, %v1219
          %1269 = vmatpush.bf16.msra.mxu0 %v1228
          %1270 = vmatpush.bf16.msra.mxu0 %v1227
          %1271 = vmatpush.bf16.msra.mxu0 %v1226
          %1272 = vmatpush.bf16.msra.mxu0 %v1225
          %1273 = vmatpush.bf16.msra.mxu0 %v1224
          %1274 = vmatpush.bf16.msra.mxu0 %v1223
          %1275 = vmatpush.bf16.msra.mxu0 %v1222
          %1276 = vmatpush.bf16.msra.mxu0 %v1221
          %1277 = vmatmul.bf16.gmra.mxu0 %v1077
          %v1278 = vpop.f32.mrf.mxu0
          %v1279 = vadd.f32 %v995, %v1278
          %v1280 = vpop.f32.mrf.mxu0
          %v1281 = vadd.f32 %v995, %v1280
          %1282 = vmatmul.bf16.gmra.mxu0 %v1080
          %v1283 = vpop.f32.mrf.mxu0
          %v1284 = vadd.f32 %v995, %v1283
          %v1285 = vpop.f32.mrf.mxu0
          %v1286 = vadd.f32 %v995, %v1285
          %1287 = vmatmul.bf16.gmra.mxu0 %v1083
          %v1288 = vpop.f32.mrf.mxu0
          %v1289 = vadd.f32 %v995, %v1288
          %v1290 = vpop.f32.mrf.mxu0
          %v1291 = vadd.f32 %v995, %v1290
          %1292 = vmatmul.bf16.gmra.mxu0 %v1086
          %v1293 = vpop.f32.mrf.mxu0
          %v1294 = vadd.f32 %v995, %v1293
          %v1295 = vpop.f32.mrf.mxu0
          %v1296 = vadd.f32 %v995, %v1295
          %1297 = vmatmul.bf16.gmra.mxu0 %v1089
          %v1298 = vpop.f32.mrf.mxu0
          %v1299 = vadd.f32 %v995, %v1298
          %v1300 = vpop.f32.mrf.mxu0
          %v1301 = vadd.f32 %v995, %v1300
          %1302 = vmatmul.bf16.gmra.mxu0 %v1092
          %v1303 = vpop.f32.mrf.mxu0
          %v1304 = vadd.f32 %v995, %v1303
          %v1305 = vpop.f32.mrf.mxu0
          %v1306 = vadd.f32 %v995, %v1305
          %1307 = vmatmul.bf16.gmra.mxu0 %v1095
          %v1308 = vpop.f32.mrf.mxu0
          %v1309 = vadd.f32 %v995, %v1308
          %v1310 = vpop.f32.mrf.mxu0
          %v1311 = vadd.f32 %v995, %v1310
          %1312 = vmatmul.bf16.gmra.mxu0 %v1098
          %v1313 = vpop.f32.mrf.mxu0
          %v1314 = vadd.f32 %v995, %v1313
          %v1315 = vpop.f32.mrf.mxu0
          %v1316 = vadd.f32 %v995, %v1315
          %1317 = vdwg.mxu0
          %1318 = vmatpush.bf16.msra.mxu0 %v1236
          %1319 = vmatpush.bf16.msra.mxu0 %v1235
          %1320 = vmatpush.bf16.msra.mxu0 %v1234
          %1321 = vmatpush.bf16.msra.mxu0 %v1233
          %1322 = vmatpush.bf16.msra.mxu0 %v1232
          %1323 = vmatpush.bf16.msra.mxu0 %v1231
          %1324 = vmatpush.bf16.msra.mxu0 %v1230
          %1325 = vmatpush.bf16.msra.mxu0 %v1229
          %1326 = vmatmul.bf16.gmra.mxu0 %v1078
          %v1327 = vpop.f32.mrf.mxu0
          %v1328 = vadd.f32 %v1279, %v1327
          %v1329 = vpop.f32.mrf.mxu0
          %v1330 = vadd.f32 %v1281, %v1329
          %1331 = vmatmul.bf16.gmra.mxu0 %v1081
          %v1332 = vpop.f32.mrf.mxu0
          %v1333 = vadd.f32 %v1284, %v1332
          %v1334 = vpop.f32.mrf.mxu0
          %v1335 = vadd.f32 %v1286, %v1334
          %1336 = vmatmul.bf16.gmra.mxu0 %v1084
          %v1337 = vpop.f32.mrf.mxu0
          %v1338 = vadd.f32 %v1289, %v1337
          %v1339 = vpop.f32.mrf.mxu0
          %v1340 = vadd.f32 %v1291, %v1339
          %1341 = vmatmul.bf16.gmra.mxu0 %v1087
          %v1342 = vpop.f32.mrf.mxu0
          %v1343 = vadd.f32 %v1294, %v1342
          %v1344 = vpop.f32.mrf.mxu0
          %v1345 = vadd.f32 %v1296, %v1344
          %1346 = vmatmul.bf16.gmra.mxu0 %v1090
          %v1347 = vpop.f32.mrf.mxu0
          %v1348 = vadd.f32 %v1299, %v1347
          %v1349 = vpop.f32.mrf.mxu0
          %v1350 = vadd.f32 %v1301, %v1349
          %1351 = vmatmul.bf16.gmra.mxu0 %v1093
          %v1352 = vpop.f32.mrf.mxu0
          %v1353 = vadd.f32 %v1304, %v1352
          %v1354 = vpop.f32.mrf.mxu0
          %v1355 = vadd.f32 %v1306, %v1354
          %1356 = vmatmul.bf16.gmra.mxu0 %v1096
          %v1357 = vpop.f32.mrf.mxu0
          %v1358 = vadd.f32 %v1309, %v1357
          %v1359 = vpop.f32.mrf.mxu0
          %v1360 = vadd.f32 %v1311, %v1359
          %1361 = vmatmul.bf16.gmra.mxu0 %v1099
          %v1362 = vpop.f32.mrf.mxu0
          %v1363 = vadd.f32 %v1314, %v1362
          %v1364 = vpop.f32.mrf.mxu0
          %v1365 = vadd.f32 %v1316, %v1364
          %1366 = vdwg.mxu0
          %1367 = vmatpush.bf16.msra.mxu0 %v1244
          %1368 = vmatpush.bf16.msra.mxu0 %v1243
          %1369 = vmatpush.bf16.msra.mxu0 %v1242
          %1370 = vmatpush.bf16.msra.mxu0 %v1241
          %1371 = vmatpush.bf16.msra.mxu0 %v1240
          %1372 = vmatpush.bf16.msra.mxu0 %v1239
          %1373 = vmatpush.bf16.msra.mxu0 %v1238
          %1374 = vmatpush.bf16.msra.mxu0 %v1237
          %1375 = vmatmul.bf16.gmra.mxu0 %v1079
          %v1376 = vpop.f32.mrf.mxu0
          %v1377 = vadd.f32 %v1328, %v1376
          %v1378 = vpop.f32.mrf.mxu0
          %v1379 = vadd.f32 %v1330, %v1378
          %1380 = vmatmul.bf16.gmra.mxu0 %v1082
          %v1381 = vpop.f32.mrf.mxu0
          %v1382 = vadd.f32 %v1333, %v1381
          %v1383 = vpop.f32.mrf.mxu0
          %v1384 = vadd.f32 %v1335, %v1383
          %1385 = vmatmul.bf16.gmra.mxu0 %v1085
          %v1386 = vpop.f32.mrf.mxu0
          %v1387 = vadd.f32 %v1338, %v1386
          %v1388 = vpop.f32.mrf.mxu0
          %v1389 = vadd.f32 %v1340, %v1388
          %1390 = vmatmul.bf16.gmra.mxu0 %v1088
          %v1391 = vpop.f32.mrf.mxu0
          %v1392 = vadd.f32 %v1343, %v1391
          %v1393 = vpop.f32.mrf.mxu0
          %v1394 = vadd.f32 %v1345, %v1393
          %1395 = vmatmul.bf16.gmra.mxu0 %v1091
          %v1396 = vpop.f32.mrf.mxu0
          %v1397 = vadd.f32 %v1348, %v1396
          %v1398 = vpop.f32.mrf.mxu0
          %v1399 = vadd.f32 %v1350, %v1398
          %1400 = vmatmul.bf16.gmra.mxu0 %v1094
          %v1401 = vpop.f32.mrf.mxu0
          %v1402 = vadd.f32 %v1353, %v1401
          %v1403 = vpop.f32.mrf.mxu0
          %v1404 = vadd.f32 %v1355, %v1403
          %1405 = vmatmul.bf16.gmra.mxu0 %v1097
          %v1406 = vpop.f32.mrf.mxu0
          %v1407 = vadd.f32 %v1358, %v1406
          %v1408 = vpop.f32.mrf.mxu0
          %v1409 = vadd.f32 %v1360, %v1408
          %1410 = vmatmul.bf16.gmra.mxu0 %v1100
          %v1411 = vpop.f32.mrf.mxu0
          %v1412 = vadd.f32 %v1363, %v1411
          %v1413 = vpop.f32.mrf.mxu0
          %v1414 = vadd.f32 %v1365, %v1413
          %1415 = vdwg.mxu0
          %v1416 = vlaneseq
          %v1417 = vand.u32 %v1416, 127
          %vm1418 = vcmp.lt.s32.totalorder %v1417, 7
          %v1419 = vsel %vm1418, %v1377, -1e+30
          %v1420 = vsel %vm1418, %v1379, -1e+30
          %v1421 = vsel %vm1418, %v1382, -1e+30
          %v1422 = vsel %vm1418, %v1384, -1e+30
          %v1423 = vsel %vm1418, %v1387, -1e+30
          %v1424 = vsel %vm1418, %v1389, -1e+30
          %v1425 = vsel %vm1418, %v1392, -1e+30
          %v1426 = vsel %vm1418, %v1394, -1e+30
          %v1427 = vsel %vm1418, %v1397, -1e+30
          %v1428 = vsel %vm1418, %v1399, -1e+30
          %v1429 = vsel %vm1418, %v1402, -1e+30
          %v1430 = vsel %vm1418, %v1404, -1e+30
          %v1431 = vsel %vm1418, %v1407, -1e+30
          %v1432 = vsel %vm1418, %v1409, -1e+30
          %v1433 = vsel %vm1418, %v1412, -1e+30
          %v1434 = vsel %vm1418, %v1414, -1e+30
          %1435 = vmax.xlane.f32.xlu0 %v1419
          %v1436 = vpop.xlane.xlu0 %1435
          %1437 = vmax.xlane.f32.xlu0 %v1420
          %v1438 = vpop.xlane.xlu0 %1437
          %1439 = vmax.xlane.f32.xlu0 %v1421
          %v1440 = vpop.xlane.xlu0 %1439
          %1441 = vmax.xlane.f32.xlu0 %v1422
          %v1442 = vpop.xlane.xlu0 %1441
          %1443 = vmax.xlane.f32.xlu0 %v1423
          %v1444 = vpop.xlane.xlu0 %1443
          %1445 = vmax.xlane.f32.xlu0 %v1424
          %v1446 = vpop.xlane.xlu0 %1445
          %1447 = vmax.xlane.f32.xlu0 %v1425
          %v1448 = vpop.xlane.xlu0 %1447
          %1449 = vmax.xlane.f32.xlu0 %v1426
          %v1450 = vpop.xlane.xlu0 %1449
          %1451 = vmax.xlane.f32.xlu0 %v1427
          %v1452 = vpop.xlane.xlu0 %1451
          %1453 = vmax.xlane.f32.xlu0 %v1428
          %v1454 = vpop.xlane.xlu0 %1453
          %1455 = vmax.xlane.f32.xlu0 %v1429
          %v1456 = vpop.xlane.xlu0 %1455
          %1457 = vmax.xlane.f32.xlu0 %v1430
          %v1458 = vpop.xlane.xlu0 %1457
          %1459 = vmax.xlane.f32.xlu0 %v1431
          %v1460 = vpop.xlane.xlu0 %1459
          %1461 = vmax.xlane.f32.xlu0 %v1432
          %v1462 = vpop.xlane.xlu0 %1461
          %1463 = vmax.xlane.f32.xlu0 %v1433
          %v1464 = vpop.xlane.xlu0 %1463
          %1465 = vmax.xlane.f32.xlu0 %v1434
          %v1466 = vpop.xlane.xlu0 %1465
          %v1467 = vsub.f32 %v1419, %v1436
          %v1468 = vsub.f32 %v1420, %v1438
          %v1469 = vsub.f32 %v1421, %v1440
          %v1470 = vsub.f32 %v1422, %v1442
          %v1471 = vsub.f32 %v1423, %v1444
          %v1472 = vsub.f32 %v1424, %v1446
          %v1473 = vsub.f32 %v1425, %v1448
          %v1474 = vsub.f32 %v1426, %v1450
          %v1475 = vsub.f32 %v1427, %v1452
          %v1476 = vsub.f32 %v1428, %v1454
          %v1477 = vsub.f32 %v1429, %v1456
          %v1478 = vsub.f32 %v1430, %v1458
          %v1479 = vsub.f32 %v1431, %v1460
          %v1480 = vsub.f32 %v1432, %v1462
          %v1481 = vsub.f32 %v1433, %v1464
          %v1482 = vsub.f32 %v1434, %v1466
          %v1483 = vmul.f32 %v1467, 1.442695
          %v1484 = vpow.pop %v1483
          %v1485 = vmul.f32 %v1468, 1.442695
          %v1486 = vpow.pop %v1485
          %v1487 = vmul.f32 %v1469, 1.442695
          %v1488 = vpow.pop %v1487
          %v1489 = vmul.f32 %v1470, 1.442695
          %v1490 = vpow.pop %v1489
          %v1491 = vmul.f32 %v1471, 1.442695
          %v1492 = vpow.pop %v1491
          %v1493 = vmul.f32 %v1472, 1.442695
          %v1494 = vpow.pop %v1493
          %v1495 = vmul.f32 %v1473, 1.442695
          %v1496 = vpow.pop %v1495
          %v1497 = vmul.f32 %v1474, 1.442695
          %v1498 = vpow.pop %v1497
          %v1499 = vmul.f32 %v1475, 1.442695
          %v1500 = vpow.pop %v1499
          %v1501 = vmul.f32 %v1476, 1.442695
          %v1502 = vpow.pop %v1501
          %v1503 = vmul.f32 %v1477, 1.442695
          %v1504 = vpow.pop %v1503
          %v1505 = vmul.f32 %v1478, 1.442695
          %v1506 = vpow.pop %v1505
          %v1507 = vmul.f32 %v1479, 1.442695
          %v1508 = vpow.pop %v1507
          %v1509 = vmul.f32 %v1480, 1.442695
          %v1510 = vpow.pop %v1509
          %v1511 = vmul.f32 %v1481, 1.442695
          %v1512 = vpow.pop %v1511
          %v1513 = vmul.f32 %v1482, 1.442695
          %v1514 = vpow.pop %v1513
          %1515 = vadd.xlane.f32.xlu0 %v1484
          %v1516 = vpop.xlane.xlu0 %1515
          %1517 = vadd.xlane.f32.xlu0 %v1486
          %v1518 = vpop.xlane.xlu0 %1517
          %1519 = vadd.xlane.f32.xlu0 %v1488
          %v1520 = vpop.xlane.xlu0 %1519
          %1521 = vadd.xlane.f32.xlu0 %v1490
          %v1522 = vpop.xlane.xlu0 %1521
          %1523 = vadd.xlane.f32.xlu0 %v1492
          %v1524 = vpop.xlane.xlu0 %1523
          %1525 = vadd.xlane.f32.xlu0 %v1494
          %v1526 = vpop.xlane.xlu0 %1525
          %1527 = vadd.xlane.f32.xlu0 %v1496
          %v1528 = vpop.xlane.xlu0 %1527
          %1529 = vadd.xlane.f32.xlu0 %v1498
          %v1530 = vpop.xlane.xlu0 %1529
          %1531 = vadd.xlane.f32.xlu0 %v1500
          %v1532 = vpop.xlane.xlu0 %1531
          %1533 = vadd.xlane.f32.xlu0 %v1502
          %v1534 = vpop.xlane.xlu0 %1533
          %1535 = vadd.xlane.f32.xlu0 %v1504
          %v1536 = vpop.xlane.xlu0 %1535
          %1537 = vadd.xlane.f32.xlu0 %v1506
          %v1538 = vpop.xlane.xlu0 %1537
          %1539 = vadd.xlane.f32.xlu0 %v1508
          %v1540 = vpop.xlane.xlu0 %1539
          %1541 = vadd.xlane.f32.xlu0 %v1510
          %v1542 = vpop.xlane.xlu0 %1541
          %1543 = vadd.xlane.f32.xlu0 %v1512
          %v1544 = vpop.xlane.xlu0 %1543
          %1545 = vadd.xlane.f32.xlu0 %v1514
          %v1546 = vpop.xlane.xlu0 %1545
          %v1547 = vlog2.pop %v1516
          %v1548 = vmul.f32 %v1547, 0.6931472
          %v1549 = vlog2.pop %v1518
          %v1550 = vmul.f32 %v1549, 0.6931472
          %v1551 = vlog2.pop %v1520
          %v1552 = vmul.f32 %v1551, 0.6931472
          %v1553 = vlog2.pop %v1522
          %v1554 = vmul.f32 %v1553, 0.6931472
          %v1555 = vlog2.pop %v1524
          %v1556 = vmul.f32 %v1555, 0.6931472
          %v1557 = vlog2.pop %v1526
          %v1558 = vmul.f32 %v1557, 0.6931472
          %v1559 = vlog2.pop %v1528
          %v1560 = vmul.f32 %v1559, 0.6931472
          %v1561 = vlog2.pop %v1530
          %v1562 = vmul.f32 %v1561, 0.6931472
          %v1563 = vlog2.pop %v1532
          %v1564 = vmul.f32 %v1563, 0.6931472
          %v1565 = vlog2.pop %v1534
          %v1566 = vmul.f32 %v1565, 0.6931472
          %v1567 = vlog2.pop %v1536
          %v1568 = vmul.f32 %v1567, 0.6931472
          %v1569 = vlog2.pop %v1538
          %v1570 = vmul.f32 %v1569, 0.6931472
          %v1571 = vlog2.pop %v1540
          %v1572 = vmul.f32 %v1571, 0.6931472
          %v1573 = vlog2.pop %v1542
          %v1574 = vmul.f32 %v1573, 0.6931472
          %v1575 = vlog2.pop %v1544
          %v1576 = vmul.f32 %v1575, 0.6931472
          %v1577 = vlog2.pop %v1546
          %v1578 = vmul.f32 %v1577, 0.6931472
          %v1579 = vsub.f32 %v1467, %v1548
          %v1580 = vsub.f32 %v1468, %v1550
          %v1581 = vsub.f32 %v1469, %v1552
          %v1582 = vsub.f32 %v1470, %v1554
          %v1583 = vsub.f32 %v1471, %v1556
          %v1584 = vsub.f32 %v1472, %v1558
          %v1585 = vsub.f32 %v1473, %v1560
          %v1586 = vsub.f32 %v1474, %v1562
          %v1587 = vsub.f32 %v1475, %v1564
          %v1588 = vsub.f32 %v1476, %v1566
          %v1589 = vsub.f32 %v1477, %v1568
          %v1590 = vsub.f32 %v1478, %v1570
          %v1591 = vsub.f32 %v1479, %v1572
          %v1592 = vsub.f32 %v1480, %v1574
          %v1593 = vsub.f32 %v1481, %v1576
          %v1594 = vsub.f32 %v1482, %v1578
          %1595 = vst [vmem:[%s438] sm:$0xff] %v1579
          %1596 = vst [vmem:[%s438 + $0x8] sm:$0xff] %v1580
          %1597 = vst [vmem:[%s438 + $0x10] sm:$0xff] %v1581
          %1598 = vst [vmem:[%s438 + $0x18] sm:$0xff] %v1582
          %1599 = vst [vmem:[%s438 + $0x20] sm:$0xff] %v1583
          %1600 = vst [vmem:[%s438 + $0x28] sm:$0xff] %v1584
          %1601 = vst [vmem:[%s438 + $0x30] sm:$0xff] %v1585
          %1602 = vst [vmem:[%s438 + $0x38] sm:$0xff] %v1586
          %1603 = vst [vmem:[%s438 + $0x40] sm:$0xff] %v1587
          %1604 = vst [vmem:[%s438 + $0x48] sm:$0xff] %v1588
          %1605 = vst [vmem:[%s438 + $0x50] sm:$0xff] %v1589
          %1606 = vst [vmem:[%s438 + $0x58] sm:$0xff] %v1590
          %1607 = vst [vmem:[%s438 + $0x60] sm:$0xff] %v1591
          %1608 = vst [vmem:[%s438 + $0x68] sm:$0xff] %v1592
          %1609 = vst [vmem:[%s438 + $0x70] sm:$0xff] %v1593
          %1610 = vst [vmem:[%s438 + $0x78] sm:$0xff] %v1594
        $region93: #{mixhop_forward.5} parent=80 // pred_fallthru
          _
        %s1611 = smul.u32 16, %s21
        %p1612 = scmp.lt.s32.totalorder %s1611, 47
        %s1613 = scalar_select %p1612, %s1611, 47
        %s1614 = smul.addr %s1613, 8
        %s1615 = scalar_lea.vmem %s6, %s1614
        // Predicated region
        $region94: #{mixhop_forward.5} parent=80 // pred_check
          %p1616 = pneg %p195
        $region95: #{mixhop_forward.5} parent=80 // pred_check_branch
          %1618 = sbr.rel (%p1616) target = $region97
        $region96: #{mixhop_forward.5} parent=80 // pred_region
          %s1619 = smul.u32 16, %s21
        $region97: #{mixhop_forward.5} parent=80 // pred_fallthru
          _
      $region81: #{mixhop_forward.5} parent=5 // pred_fallthru
        _
      %p1620 = scmp.le.s32.totalorder 2, %s12
      // Predicated region
      $region98: #{mixhop_forward.5} parent=5 // pred_check
        %p1621 = pneg %p1620
      $region99: #{mixhop_forward.5} parent=5 // pred_check_branch
        %1623 = sbr.rel (%p1621) target = $region101
      $region100: #{mixhop_forward.5} parent=5 // pred_region
        %s1624 = ssub.s32 %s12, 2
        // Predicated region
        $region102: #{mixhop_forward.5} parent=100 // pred_check
          %p1625 = pneg %p201
        $region103: #{mixhop_forward.5} parent=100 // pred_check_branch
          %1627 = sbr.rel (%p1625) target = $region105
        $region104: #{mixhop_forward.5} parent=100 // pred_region
          %s1628 = smul.u32 16, %s23
          %p1629 = scmp.lt.s32.totalorder %s1628, 47
          %s1630 = scalar_select %p1629, %s1628, 47
          %s1631 = smul.addr %s1630, 8
          %s1632 = scalar_lea.vmem %s6, %s1631
        $region105: #{mixhop_forward.5} parent=100 // pred_fallthru
          _
      $region101: #{mixhop_forward.5} parent=5 // pred_fallthru
        _
    $region6: #{mixhop_forward.5} parent=1 // loop_footer
      %s16 = sadd.s32 1, %s12
    $region7: #{mixhop_forward.5} parent=1 // loop_footer_branch
      %11 = sbr.rel target = $region3
    $region8: #{mixhop_forward.5} parent=1 // loop_exit
      _

</llo_original>
